<compile_context>
chip_gen: v7x
topology: tpu7x:2x2x1
jax: 0.10.0
libtpu: 0.0.40
codegen_flags: <defaults>
</compile_context>

<pallas_src>
import functools
import math

import jax
import jax.numpy as jnp
import numpy as np
from jax.experimental import pallas as pl
from jax.experimental.pallas import tpu as pltpu

LANE = 128


def _cheby(i, x):
    """Chebyshev polynomial T_i(x), scalar Python math."""
    if i == 0:
        return 1.0
    if i == 1:
        return x
    t0, t1 = 1.0, x
    for _ in range(2, i + 1):
        t0, t1 = t1, 2.0 * x * t1 - t0
    return t1


def chebyshev_basis(K):
    """T[i, j] = T_i(cos((K - j + 0.5) * pi / (K + 1))) — static, depends only on K."""
    T = np.zeros((K + 1, K + 1), dtype=np.float64)
    for i in range(K + 1):
        for j in range(K + 1):
            x_j = math.cos((K - j + 0.5) * math.pi / (K + 1))
            T[i, j] = _cheby(i, x_j)
    return jnp.asarray(T, dtype=jnp.float32)


def effective_coefficients(temp, K):
    """coe[i] = 2/(K+1) * sum_j relu(temp)[j] * T_i(x_j);  coe_eff[0] = coe[0]/2."""
    T = chebyshev_basis(K)
    coe = (2.0 / (K + 1)) * (T @ jnp.maximum(temp, 0.0))
    return coe.at[0].multiply(0.5)


def build_padded_params(temp, params, K, hidden_pad, classes_pad):
    """Fold Chebyshev coefficients into lin1; zero-pad hidden/classes to 128 lanes.

    lin1/lin2/lin3 weights are returned in bf16 (f32 accumulation happens on the
    MXU); biases stay f32 (added after accumulation).
    """
    w1, b1, w2, b2, w3, b3 = params            # Linear weights stored [in, out]
    F, H = w1.shape
    C = w3.shape[1]
    assert H <= hidden_pad and C <= classes_pad
    coe = effective_coefficients(temp, K)      # (K+1,), coe[0] already halved

    w1_pad = jnp.zeros((F, hidden_pad), jnp.float32).at[:, :H].set(w1)
    # W1_eff[(K+1)*F, Hpad]: row-block k is coe[k] * W1 — so
    #   x_cat @ W1_eff == (sum_k coe[k] * x_k) @ W1  (the module's weighted sum + lin1).
    w1_eff = (coe[:, None, None] * w1_pad[None]).reshape((K + 1) * F, hidden_pad)

    b1_pad = jnp.zeros((1, hidden_pad), jnp.float32).at[:, :H].set(b1.reshape(1, -1))
    w2_pad = jnp.zeros((hidden_pad, hidden_pad), jnp.float32).at[:H, :H].set(w2)
    b2_pad = jnp.zeros((1, hidden_pad), jnp.float32).at[:, :H].set(b2.reshape(1, -1))
    w3_pad = jnp.zeros((hidden_pad, classes_pad), jnp.float32).at[:H, :C].set(w3)
    b3_pad = jnp.zeros((1, classes_pad), jnp.float32).at[:, :C].set(b3.reshape(1, -1))
    return (w1_eff.astype(jnp.bfloat16), b1_pad,
            w2_pad.astype(jnp.bfloat16), b2_pad,
            w3_pad.astype(jnp.bfloat16), b3_pad)


def chebnetii_kernel(st_ref, x_ref, w1_ref, b1_ref, w2_ref, b2_ref,
                     w3_ref, b3_ref, out_ref, *, num_classes):
    """One row-tile: fused (Chebyshev sum + lin1) -> ReLU -> lin2 -> ReLU -> lin3
    -> masked log_softmax.

    st_ref : SMEM (1,)                scalar-prefetch block offset (used by index_maps)
    x_ref  : VMEM (TM, (K+1)*F) bf16  feature-concatenated propagated features
    w1_ref : VMEM ((K+1)*F, Hp) bf16  coefficient-folded lin1 weight
    w2_ref : VMEM (Hp, Hp)  bf16
    w3_ref : VMEM (Hp, Cp)  bf16
    b*_ref : VMEM (1, Hp/Cp) f32
    out_ref: VMEM (TM, Cp)            log-probabilities (padded class lanes junk)
    """
    del st_ref  # only consumed by the index_maps

    # lin1 with the Chebyshev weighted sum folded into the contraction dim (MXU, f32 acc)
    h = jnp.dot(x_ref[...], w1_ref[...], preferred_element_type=jnp.float32)
    h = jnp.maximum(h + b1_ref[...], 0.0)
    # lin2 + ReLU (bf16 weights/activations, f32 accumulation)
    h = jnp.dot(h.astype(jnp.bfloat16), w2_ref[...],
                preferred_element_type=jnp.float32)
    h = jnp.maximum(h + b2_ref[...], 0.0)
    # lin3
    logits = jnp.dot(h.astype(jnp.bfloat16), w3_ref[...],
                     preferred_element_type=jnp.float32) + b3_ref[...]

    # Mask padded class lanes, then stable log_softmax along the (lane-dense) class dim.
    lane = jax.lax.broadcasted_iota(jnp.int32, logits.shape, 1)
    logits = jnp.where(lane < num_classes, logits, -1e30)
    m = jnp.max(logits, axis=1, keepdims=True)
    shifted = logits - m
    lse = jnp.log(jnp.sum(jnp.exp(shifted), axis=1, keepdims=True))
    out_ref[...] = (shifted - lse).astype(out_ref.dtype)


def _per_step_vmem_bytes(tm, f_cat, hidden_pad, classes_pad, out_itemsize):
    """Rough per-step VMEM footprint (lane-rounded x tile, default double buffers)."""
    f_cat_lanes = pl.cdiv(f_cat, LANE) * LANE      # lane rounding of the x tile
    x_buf = 2 * tm * f_cat_lanes * 2               # bf16 x, double-buffered
    out_buf = 2 * tm * classes_pad * out_itemsize  # output tile, double-buffered
    w_buf = 2 * (f_cat * hidden_pad * 2            # w1_eff (bf16)
                 + hidden_pad * hidden_pad * 2     # w2 (bf16)
                 + hidden_pad * classes_pad * 2    # w3 (bf16)
                 + 3 * 8 * LANE * 4)               # biases padded to (8,128) f32
    act_buf = 4 * tm * hidden_pad * 4              # f32/bf16 intermediates (rough)
    return x_buf + out_buf + w_buf + act_buf


def chebnetii_forward(x_cat, temp, params, K, st, end, *, block_rows=512,
                      hidden_pad=128, classes_pad=128,
                      out_dtype=jnp.float32, return_padded=False):
    """x_cat: (N, (K+1)*F) bf16, feature-concatenated propagated features (built once).

    block_rows: row-tile size; sweep 256/512/1024 per chip (keep ns/TM >= ~4 for v7x
    megacore balance). out_dtype=bf16 + return_padded=True is the inference-style
    low-bandwidth path; keep f32 sliced output when feeding an NLL loss.
    """
    N, f_cat = x_cat.shape
    num_classes = params[4].shape[1]
    ns = end - st
    tm = min(block_rows, ns)
    assert st % tm == 0 and ns % tm == 0 and end <= N, "row slice must be tile-aligned"
    num_blocks = ns // tm

    w1_eff, b1p, w2p, b2p, w3p, b3p = build_padded_params(
        temp, params, K, hidden_pad, classes_pad)
    st_block = jnp.asarray([st // tm], dtype=jnp.int32)   # scalar-prefetched row offset

    kernel = functools.partial(chebnetii_kernel, num_classes=num_classes)

    out_itemsize = jnp.dtype(out_dtype).itemsize
    f_cat_lanes = pl.cdiv(f_cat, LANE) * LANE
    vmem_est = _per_step_vmem_bytes(tm, f_cat, hidden_pad, classes_pad, out_itemsize)
    # Only override the compiler's scoped-VMEM default when the estimate approaches
    # it (v5e default 16 MiB; v6e/v7x 32 MiB); leave generous headroom otherwise.
    vmem_limit = int(min(vmem_est * 1.5, 100 * 2 ** 20)) if vmem_est > 12 * 2 ** 20 else None

    flops = 2 * ns * (f_cat * hidden_pad + hidden_pad * hidden_pad
                      + hidden_pad * classes_pad)
    bytes_accessed = int(ns * f_cat_lanes * 2                       # bf16 x stream
                         + 2 * (w1_eff.size + w2p.size + w3p.size)  # bf16 weights
                         + 4 * (b1p.size + b2p.size + b3p.size)     # f32 biases
                         + ns * classes_pad * out_itemsize)         # output stream

    out_pad = pl.pallas_call(
        kernel,
        out_shape=jax.ShapeDtypeStruct((ns, classes_pad), out_dtype),
        grid_spec=pltpu.PrefetchScalarGridSpec(
            num_scalar_prefetch=1,
            grid=(num_blocks,),
            in_specs=[
                # streamed node features (double-buffered per tile)
                pl.BlockSpec((tm, f_cat), lambda i, st_r: (st_r[0] + i, 0)),
                # VMEM-resident weights / biases (constant block index -> no re-DMA)
                pl.BlockSpec((f_cat, hidden_pad), lambda i, st_r: (0, 0)),
                pl.BlockSpec((1, hidden_pad), lambda i, st_r: (0, 0)),
                pl.BlockSpec((hidden_pad, hidden_pad), lambda i, st_r: (0, 0)),
                pl.BlockSpec((1, hidden_pad), lambda i, st_r: (0, 0)),
                pl.BlockSpec((hidden_pad, classes_pad), lambda i, st_r: (0, 0)),
                pl.BlockSpec((1, classes_pad), lambda i, st_r: (0, 0)),
            ],
            out_specs=pl.BlockSpec((tm, classes_pad), lambda i, st_r: (i, 0)),
        ),
        compiler_params=pltpu.CompilerParams(
            dimension_semantics=("parallel",),
            vmem_limit_bytes=vmem_limit,
        ),
        cost_estimate=pl.CostEstimate(
            flops=int(flops),
            transcendentals=int(ns * (classes_pad + 1)),
            bytes_accessed=bytes_accessed,
        ),
    )(st_block, x_cat, w1_eff, b1p, w2p, b2p, w3p, b3p)

    if return_padded:
        return out_pad               # avoid an extra padded->sliced HBM pass
    return out_pad[:, :num_classes]


# ---------------------------------------------------------------------------
# References for correctness checking
# ---------------------------------------------------------------------------

def reference_forward_matched(x_cat, temp, params, K, st, end, *,
                              hidden_pad=128, classes_pad=128):
    """Plain-XLA reference using the exact same folded/padded/bf16 quantities."""
    num_classes = params[4].shape[1]
    w1_eff, b1p, w2p, b2p, w3p, b3p = build_padded_params(
        temp, params, K, hidden_pad, classes_pad)
    x = x_cat[st:end]
    h = jnp.dot(x, w1_eff, preferred_element_type=jnp.float32) + b1p
    h = jnp.maximum(h, 0.0)
    h = jnp.dot(h.astype(jnp.bfloat16), w2p, preferred_element_type=jnp.float32) + b2p
    h = jnp.maximum(h, 0.0)
    logits = jnp.dot(h.astype(jnp.bfloat16), w3p,
                     preferred_element_type=jnp.float32) + b3p
    return jax.nn.log_softmax(logits[:, :num_classes], axis=1)


def reference_forward_f32(x_list, temp, params, K, st, end):
    """Module-faithful f32 reference (un-folded, un-padded) — validates the folding."""
    w1, b1, w2, b2, w3, b3 = params
    coe = effective_coefficients(temp, K)
    out = coe[0] * x_list[0][st:end]
    for k in range(1, K + 1):
        out = out + coe[k] * x_list[k][st:end]
    h = jnp.maximum(out @ w1 + b1.reshape(1, -1), 0.0)
    h = jnp.maximum(h @ w2 + b2.reshape(1, -1), 0.0)
    logits = h @ w3 + b3.reshape(1, -1)
    return jax.nn.log_softmax(logits, axis=1)


if __name__ == "__main__":
    key = jax.random.PRNGKey(0)

    # Small-but-representative shapes consistent with the module's forward.
    K = 4                     # args.K
    N = 4096                  # total nodes in each propagated feature matrix
    st, end = 512, 2560       # tile-aligned row slice -> Ns = 2048 (4 steps @ TM=512)
    num_features = 32
    hidden = 64
    num_classes = 10

    keys = jax.random.split(key, K + 1 + 7)

    # x_lis: K+1 pre-propagated feature matrices [N, num_features]
    x_list = [jax.random.normal(keys[k], (N, num_features), dtype=jnp.float32)
              for k in range(K + 1)]
    # Feature-concatenated version, built once per dataset, streamed as bf16.
    x_cat = jnp.concatenate(x_list, axis=1).astype(jnp.bfloat16)

    # Non-trivial temp so all Chebyshev coefficients matter (reset_parameters uses 1.0).
    temp = 0.5 + jax.random.uniform(keys[K + 1], (K + 1,), dtype=jnp.float32)

    # Linear weights stored [in, out], biases [1, out].
    w1 = (jax.random.normal(keys[K + 2], (num_features, hidden), jnp.float32)
          / math.sqrt(num_features))
    b1 = jax.random.normal(keys[K + 3], (1, hidden), jnp.float32) * 0.01
    w2 = (jax.random.normal(keys[K + 4], (hidden, hidden), jnp.float32)
          / math.sqrt(hidden))
    b2 = jax.random.normal(keys[K + 5], (1, hidden), jnp.float32) * 0.01
    w3 = (jax.random.normal(keys[K + 6], (hidden, num_classes), jnp.float32)
          / math.sqrt(hidden))
    b3 = jax.random.normal(keys[K + 7], (1, num_classes), jnp.float32) * 0.01
    params = (w1, b1, w2, b2, w3, b3)

    # Default path: f32 log-probs sliced to num_classes (loss-friendly).
    out = chebnetii_forward(x_cat, temp, params, K, st, end)
    out = jax.block_until_ready(out)
    assert out.shape == (end - st, num_classes)

    # Tight check: same bf16 folded/padded math, plain XLA.
    ref_m = reference_forward_matched(x_cat, temp, params, K, st, end)
    np.testing.assert_allclose(np.asarray(out), np.asarray(ref_m),
                               rtol=5e-3, atol=5e-3)

    # Loose check vs module-faithful f32 math (validates the coefficient folding;
    # tolerance covers bf16 streaming of x / W1_eff / W2 / W3).
    ref_f = reference_forward_f32(x_list, temp, params, K, st, end)
    np.testing.assert_allclose(np.asarray(out), np.asarray(ref_f),
                               rtol=0.2, atol=0.2)

    # Inference-style low-bandwidth path: bf16 log-probs, padded buffer returned
    # (no wrapper slice re-copy). Halves the dominant output HBM stream.
    out_bf16 = chebnetii_forward(x_cat, temp, params, K, st, end,
                                 out_dtype=jnp.bfloat16, return_padded=True)
    out_bf16 = jax.block_until_ready(out_bf16)
    assert out_bf16.shape == (end - st, 128)
    np.testing.assert_allclose(
        np.asarray(out_bf16[:, :num_classes], dtype=np.float32),
        np.asarray(ref_m), rtol=0.02, atol=0.03)

    print("KERNEL_OK")
</pallas_src>

<mosaic_0001>
module attributes {stable_mosaic.version = 11 : i64} {
  func.func @chebnetii_kernel(%arg0: i32, %arg1: memref<1xi32, #tpu.memory_space<smem>>, %arg2: memref<512x160xbf16, #tpu.memory_space<vmem>>, %arg3: memref<160x128xbf16, #tpu.memory_space<vmem>>, %arg4: memref<1x128xf32, #tpu.memory_space<vmem>>, %arg5: memref<128x128xbf16, #tpu.memory_space<vmem>>, %arg6: memref<1x128xf32, #tpu.memory_space<vmem>>, %arg7: memref<128x128xbf16, #tpu.memory_space<vmem>>, %arg8: memref<1x128xf32, #tpu.memory_space<vmem>>, %arg9: memref<512x128xf32, #tpu.memory_space<vmem>>) attributes {dimension_semantics = [#tpu.dimension_semantics<parallel>], iteration_bounds = array<i64: 4>, scalar_prefetch = 1 : i64, scratch_operands = 0 : i64, tpu.core_type = #tpu.core_type<tc>, window_params = [{transform_indices = @transform_0, window_bounds = array<i64: 512, 160>}, {pipeline_mode = #tpu.pipeline_mode<synchronous>, transform_indices = @transform_1, window_bounds = array<i64: 160, 128>}, {pipeline_mode = #tpu.pipeline_mode<synchronous>, transform_indices = @transform_2, window_bounds = array<i64: 1, 128>}, {pipeline_mode = #tpu.pipeline_mode<synchronous>, transform_indices = @transform_3, window_bounds = array<i64: 128, 128>}, {pipeline_mode = #tpu.pipeline_mode<synchronous>, transform_indices = @transform_4, window_bounds = array<i64: 1, 128>}, {pipeline_mode = #tpu.pipeline_mode<synchronous>, transform_indices = @transform_5, window_bounds = array<i64: 128, 128>}, {pipeline_mode = #tpu.pipeline_mode<synchronous>, transform_indices = @transform_6, window_bounds = array<i64: 1, 128>}, {transform_indices = @transform_7, window_bounds = array<i64: 512, 128>}]} {
    %c0 = arith.constant 0 : index
    %c0_0 = arith.constant 0 : index
    %0 = vector.load %arg2[%c0, %c0_0] : memref<512x160xbf16, #tpu.memory_space<vmem>>, vector<512x160xbf16>
    %c0_1 = arith.constant 0 : index
    %c0_2 = arith.constant 0 : index
    %1 = vector.load %arg3[%c0_1, %c0_2] : memref<160x128xbf16, #tpu.memory_space<vmem>>, vector<160x128xbf16>
    %cst = arith.constant dense<0.000000e+00> : vector<512x128xf32>
    %2 = tpu.matmul %0, %1, %cst {dimension_numbers = #tpu.dot_dimension_numbers<[1], [0], [0], [1], [0, 0, 1, 1], [], []>} : vector<512x160xbf16>, vector<160x128xbf16>, vector<512x128xf32> -> vector<512x128xf32>
    %c0_3 = arith.constant 0 : index
    %c0_4 = arith.constant 0 : index
    %3 = vector.load %arg4[%c0_3, %c0_4] : memref<1x128xf32, #tpu.memory_space<vmem>>, vector<1x128xf32>
    %4 = vector.broadcast %3 : vector<1x128xf32> to vector<512x128xf32>
    %5 = arith.addf %2, %4 : vector<512x128xf32>
    %cst_5 = arith.constant 0.000000e+00 : f32
    %6 = vector.broadcast %cst_5 : f32 to vector<512x128xf32>
    %7 = arith.maximumf %5, %6 : vector<512x128xf32>
    %8 = arith.truncf %7 : vector<512x128xf32> to vector<512x128xbf16>
    %c0_6 = arith.constant 0 : index
    %c0_7 = arith.constant 0 : index
    %9 = vector.load %arg5[%c0_6, %c0_7] : memref<128x128xbf16, #tpu.memory_space<vmem>>, vector<128x128xbf16>
    %cst_8 = arith.constant dense<0.000000e+00> : vector<512x128xf32>
    %10 = tpu.matmul %8, %9, %cst_8 {dimension_numbers = #tpu.dot_dimension_numbers<[1], [0], [0], [1], [0, 0, 1, 1], [], []>} : vector<512x128xbf16>, vector<128x128xbf16>, vector<512x128xf32> -> vector<512x128xf32>
    %c0_9 = arith.constant 0 : index
    %c0_10 = arith.constant 0 : index
    %11 = vector.load %arg6[%c0_9, %c0_10] : memref<1x128xf32, #tpu.memory_space<vmem>>, vector<1x128xf32>
    %12 = vector.broadcast %11 : vector<1x128xf32> to vector<512x128xf32>
    %13 = arith.addf %10, %12 : vector<512x128xf32>
    %cst_11 = arith.constant 0.000000e+00 : f32
    %14 = vector.broadcast %cst_11 : f32 to vector<512x128xf32>
    %15 = arith.maximumf %13, %14 : vector<512x128xf32>
    %16 = arith.truncf %15 : vector<512x128xf32> to vector<512x128xbf16>
    %c0_12 = arith.constant 0 : index
    %c0_13 = arith.constant 0 : index
    %17 = vector.load %arg7[%c0_12, %c0_13] : memref<128x128xbf16, #tpu.memory_space<vmem>>, vector<128x128xbf16>
    %cst_14 = arith.constant dense<0.000000e+00> : vector<512x128xf32>
    %18 = tpu.matmul %16, %17, %cst_14 {dimension_numbers = #tpu.dot_dimension_numbers<[1], [0], [0], [1], [0, 0, 1, 1], [], []>} : vector<512x128xbf16>, vector<128x128xbf16>, vector<512x128xf32> -> vector<512x128xf32>
    %c0_15 = arith.constant 0 : index
    %c0_16 = arith.constant 0 : index
    %19 = vector.load %arg8[%c0_15, %c0_16] : memref<1x128xf32, #tpu.memory_space<vmem>>, vector<1x128xf32>
    %20 = vector.broadcast %19 : vector<1x128xf32> to vector<512x128xf32>
    %21 = arith.addf %18, %20 : vector<512x128xf32>
    %22 = tpu.iota {dimensions = array<i32: 1>} : vector<512x128xi32>
    %c10_i32 = arith.constant 10 : i32
    %23 = vector.broadcast %c10_i32 : i32 to vector<512x128xi32>
    %24 = arith.cmpi slt, %22, %23 : vector<512x128xi32>
    %cst_17 = arith.constant -1.000000e+30 : f32
    %25 = vector.broadcast %cst_17 : f32 to vector<512x128xf32>
    %26 = arith.select %24, %21, %25 : vector<512x128xi1>, vector<512x128xf32>
    %cst_18 = arith.constant dense<0xFF800000> : vector<512xf32>
    %27 = vector.multi_reduction <maximumf>, %26, %cst_18 [1] : vector<512x128xf32> to vector<512xf32>
    %28 = vector.shape_cast %27 : vector<512xf32> to vector<512x1xf32>
    %29 = vector.broadcast %28 : vector<512x1xf32> to vector<512x128xf32>
    %30 = arith.subf %26, %29 : vector<512x128xf32>
    %31 = math.exp %30 : vector<512x128xf32>
    %cst_19 = arith.constant dense<0.000000e+00> : vector<512xf32>
    %32 = vector.multi_reduction <add>, %31, %cst_19 [1] : vector<512x128xf32> to vector<512xf32>
    %33 = vector.shape_cast %32 : vector<512xf32> to vector<512x1xf32>
    %34 = math.log %33 : vector<512x1xf32>
    %35 = vector.broadcast %34 : vector<512x1xf32> to vector<512x128xf32>
    %36 = arith.subf %30, %35 : vector<512x128xf32>
    %c0_20 = arith.constant 0 : index
    %c0_21 = arith.constant 0 : index
    %37 = vector.load %arg9[%c0_20, %c0_21] : memref<512x128xf32, #tpu.memory_space<vmem>>, vector<512x128xf32>
    tpu.vector_store %arg9[%c0_20, %c0_21], %36 {strides = array<i32>} : memref<512x128xf32, #tpu.memory_space<vmem>>, vector<512x128xf32>,
    return
  }
  func.func @transform_0(%arg0: i32, %arg1: memref<1xi32, #tpu.memory_space<smem>>) -> (i32, i32) {
    %c0 = arith.constant 0 : index
    %0 = memref.load %arg1[%c0] : memref<1xi32, #tpu.memory_space<smem>>
    %1 = arith.addi %0, %arg0 : i32
    %c0_i32 = arith.constant 0 : i32
    %c0_i32_0 = arith.constant 0 : i32
    return %1, %c0_i32 : i32, i32
  }
  func.func @transform_1(%arg0: i32, %arg1: memref<1xi32, #tpu.memory_space<smem>>) -> (i32, i32) {
    %c0_i32 = arith.constant 0 : i32
    %c0_i32_0 = arith.constant 0 : i32
    %c0_i32_1 = arith.constant 0 : i32
    return %c0_i32, %c0_i32_0 : i32, i32
  }
  func.func @transform_2(%arg0: i32, %arg1: memref<1xi32, #tpu.memory_space<smem>>) -> (i32, i32) {
    %c0_i32 = arith.constant 0 : i32
    %c0_i32_0 = arith.constant 0 : i32
    %c0_i32_1 = arith.constant 0 : i32
    return %c0_i32, %c0_i32_0 : i32, i32
  }
  func.func @transform_3(%arg0: i32, %arg1: memref<1xi32, #tpu.memory_space<smem>>) -> (i32, i32) {
    %c0_i32 = arith.constant 0 : i32
    %c0_i32_0 = arith.constant 0 : i32
    %c0_i32_1 = arith.constant 0 : i32
    return %c0_i32, %c0_i32_0 : i32, i32
  }
  func.func @transform_4(%arg0: i32, %arg1: memref<1xi32, #tpu.memory_space<smem>>) -> (i32, i32) {
    %c0_i32 = arith.constant 0 : i32
    %c0_i32_0 = arith.constant 0 : i32
    %c0_i32_1 = arith.constant 0 : i32
    return %c0_i32, %c0_i32_0 : i32, i32
  }
  func.func @transform_5(%arg0: i32, %arg1: memref<1xi32, #tpu.memory_space<smem>>) -> (i32, i32) {
    %c0_i32 = arith.constant 0 : i32
    %c0_i32_0 = arith.constant 0 : i32
    %c0_i32_1 = arith.constant 0 : i32
    return %c0_i32, %c0_i32_0 : i32, i32
  }
  func.func @transform_6(%arg0: i32, %arg1: memref<1xi32, #tpu.memory_space<smem>>) -> (i32, i32) {
    %c0_i32 = arith.constant 0 : i32
    %c0_i32_0 = arith.constant 0 : i32
    %c0_i32_1 = arith.constant 0 : i32
    return %c0_i32, %c0_i32_0 : i32, i32
  }
  func.func @transform_7(%arg0: i32, %arg1: memref<1xi32, #tpu.memory_space<smem>>) -> (i32, i32) {
    %c0_i32 = arith.constant 0 : i32
    %c0_i32_0 = arith.constant 0 : i32
    return %arg0, %c0_i32 : i32, i32
  }
}

</mosaic_0001>

<llo_original>
// kernel: tpu_custom_call.1
$region0: #{tpu_custom_call.1}
  #allocation0 [shape = 'u32[]', space=smem, size = 0x4, offset = 0x4, fixed_abs, tag = 'smem constant byte address 0x4 - core index']
  #allocation1 [shape = 'u32[144,128]{1,0:T(1,128)}', space=vmem, size = 0x12000, scoped, tag = 'internal scratch']
  #allocation2 [shape = 's32[1]{0}', space=sflag, size = 0x4, scoped, tag = 'scoped memory for tpu_custom_call.1']
  #allocation3 [shape = 's32[1]{0:T(128)S(6)}', space=smem, size = 0x200, scoped, tag = 'prefetched SMEM operand 0']
  %s0 = inlined_call_operand.<no memory space> [shape: s32[1], index: 0, kind: input, shape index: {}]
  %s1 = inlined_call_operand.vmem [shape: bf16[4096,160], index: 1, kind: input, shape index: {}]
  %s2 = inlined_call_operand.vmem [shape: bf16[160,128], index: 2, kind: input, shape index: {}]
  %s3 = inlined_call_operand.vmem [shape: f32[1,128], index: 3, kind: input, shape index: {}]
  %s4 = inlined_call_operand.vmem [shape: bf16[128,128], index: 4, kind: input, shape index: {}]
  %s5 = inlined_call_operand.vmem [shape: f32[1,128], index: 5, kind: input, shape index: {}]
  %s6 = inlined_call_operand.vmem [shape: bf16[128,128], index: 6, kind: input, shape index: {}]
  %s7 = inlined_call_operand.vmem [shape: f32[1,128], index: 7, kind: input, shape index: {}]
  %s8 = inlined_call_operand.hbm [shape: f32[2048,128], index: 8, kind: output, shape index: {}]
  %s9 = sld [smem:[#allocation0]]
  $region61: #{tpu_custom_call.1} parent=0
    _
  %s11 = ssub.s32 1, %s9
  %s12 = scalar_select 0, %s11, %s9
  %13 = sst [smem:[#allocation3]] %s0
  $region1: #{tpu_custom_call.1} parent=0
    #allocation4 [shape = 'u8[524288]{0}', space=vmem, size = 0x80000, scoped, tag = 'output window, operand 0']
    #allocation5 [shape = 's32[2]{0}', space=sflag, size = 0x8, scoped, tag = 'scoped memory for tpu_custom_call.1']
    %14 = vsyncpa [#allocation5], 0
    %s15 = scalar_lea.sflag [#allocation5], 1
    %16 = vsyncpa %s15, 0
    loop: start=0, step=1, limit=6
    $region2: #{tpu_custom_call.1} parent=1 // loop_pre_header
      _
    $region3: #{tpu_custom_call.1} parent=1 // loop_header
      %s18 = sphi 0, %s22
      %p19 = scmp.ge.s32.totalorder %s18, 6
      %s32 = sphi 0, %s34
      %s35 = sphi 0, %s32
      %s36 = sphi 0, %s35
      %s52 = sphi 0, %s36
      %s56 = sphi 0, %s56
      %s58 = sphi 0, %s56
      %s59 = sphi 0, %s58
      %s73 = sphi 0, %s59
      %s77 = sphi 0, %s77
      %s79 = sphi 0, %s77
      %s80 = sphi 0, %s79
      %s94 = sphi 0, %s80
      %s98 = sphi 0, %s98
      %s100 = sphi 0, %s98
      %s101 = sphi 0, %s100
      %s115 = sphi 0, %s101
      %s119 = sphi 0, %s119
      %s121 = sphi 0, %s119
      %s122 = sphi 0, %s121
      %s136 = sphi 0, %s122
      %s140 = sphi 0, %s140
      %s142 = sphi 0, %s140
      %s143 = sphi 0, %s142
      %s157 = sphi 0, %s143
      %s161 = sphi 0, %s161
      %s163 = sphi 0, %s161
      %s164 = sphi 0, %s163
      %s178 = sphi 0, %s164
      %s184 = sphi 0, %s186
      %s187 = sphi 0, %s184
      %s188 = sphi 0, %s187
      %s204 = sphi 0, %s188
    $region4: #{tpu_custom_call.1} parent=1 // loop_header_branch
      %21 = sbr.rel (%p19) target = $region8
    $region5: #{tpu_custom_call.1} parent=1 // loop_body
      %s23 = ssub.s32 %s18, 1
      %s24 = ssub.s32 %s18, 2
      %s25 = sadd.s32 %s18, 1
      %s26 = sld [smem:[#allocation3]]
      %s27 = sadd.s32 %s26, %s18
      %s28 = sld [smem:[#allocation3]]
      %s29 = sadd.s32 %s28, %s25
      %s30 = ssub.s32 %s27, %s29
      %p31 = scmp.eq.s32.totalorder %s30, 0
      %s33 = sadd.s32 %s32, 1
      %s34 = scalar_select %p31, %s32, %s33
      %p37 = pneg %p31
      %p38 = scmp.eq.s32.totalorder %s18, 3
      %p39 = por %p37, %p38
      %p40 = scmp.ne.s32.totalorder %s32, %s35
      %p41 = scmp.eq.s32.totalorder %s18, 0
      %p42 = por %p40, %p41
      %p43 = scmp.ne.s32.totalorder %s32, %s35
      %p44 = scmp.eq.s32.totalorder %s23, 3
      %p45 = por %p43, %p44
      %p46 = scmp.ne.s32.totalorder %s35, %s36
      %p47 = scmp.eq.s32.totalorder %s23, 0
      %p48 = por %p46, %p47
      %p49 = scmp.ne.s32.totalorder %s35, %s36
      %p50 = scmp.eq.s32.totalorder %s24, 3
      %p51 = por %p49, %p50
      %p53 = scmp.ne.s32.totalorder %s36, %s52
      %p54 = scmp.eq.s32.totalorder %s24, 0
      %p55 = por %p53, %p54
      %s57 = sadd.s32 %s56, 1
      %p60 = scmp.eq.s32.totalorder %s18, 3
      %p61 = scmp.ne.s32.totalorder %s56, %s58
      %p62 = scmp.eq.s32.totalorder %s18, 0
      %p63 = por %p61, %p62
      %p64 = scmp.ne.s32.totalorder %s56, %s58
      %p65 = scmp.eq.s32.totalorder %s23, 3
      %p66 = por %p64, %p65
      %p67 = scmp.ne.s32.totalorder %s58, %s59
      %p68 = scmp.eq.s32.totalorder %s23, 0
      %p69 = por %p67, %p68
      %p70 = scmp.ne.s32.totalorder %s58, %s59
      %p71 = scmp.eq.s32.totalorder %s24, 3
      %p72 = por %p70, %p71
      %p74 = scmp.ne.s32.totalorder %s59, %s73
      %p75 = scmp.eq.s32.totalorder %s24, 0
      %p76 = por %p74, %p75
      %s78 = sadd.s32 %s77, 1
      %p81 = scmp.eq.s32.totalorder %s18, 3
      %p82 = scmp.ne.s32.totalorder %s77, %s79
      %p83 = scmp.eq.s32.totalorder %s18, 0
      %p84 = por %p82, %p83
      %p85 = scmp.ne.s32.totalorder %s77, %s79
      %p86 = scmp.eq.s32.totalorder %s23, 3
      %p87 = por %p85, %p86
      %p88 = scmp.ne.s32.totalorder %s79, %s80
      %p89 = scmp.eq.s32.totalorder %s23, 0
      %p90 = por %p88, %p89
      %p91 = scmp.ne.s32.totalorder %s79, %s80
      %p92 = scmp.eq.s32.totalorder %s24, 3
      %p93 = por %p91, %p92
      %p95 = scmp.ne.s32.totalorder %s80, %s94
      %p96 = scmp.eq.s32.totalorder %s24, 0
      %p97 = por %p95, %p96
      %s99 = sadd.s32 %s98, 1
      %p102 = scmp.eq.s32.totalorder %s18, 3
      %p103 = scmp.ne.s32.totalorder %s98, %s100
      %p104 = scmp.eq.s32.totalorder %s18, 0
      %p105 = por %p103, %p104
      %p106 = scmp.ne.s32.totalorder %s98, %s100
      %p107 = scmp.eq.s32.totalorder %s23, 3
      %p108 = por %p106, %p107
      %p109 = scmp.ne.s32.totalorder %s100, %s101
      %p110 = scmp.eq.s32.totalorder %s23, 0
      %p111 = por %p109, %p110
      %p112 = scmp.ne.s32.totalorder %s100, %s101
      %p113 = scmp.eq.s32.totalorder %s24, 3
      %p114 = por %p112, %p113
      %p116 = scmp.ne.s32.totalorder %s101, %s115
      %p117 = scmp.eq.s32.totalorder %s24, 0
      %p118 = por %p116, %p117
      %s120 = sadd.s32 %s119, 1
      %p123 = scmp.eq.s32.totalorder %s18, 3
      %p124 = scmp.ne.s32.totalorder %s119, %s121
      %p125 = scmp.eq.s32.totalorder %s18, 0
      %p126 = por %p124, %p125
      %p127 = scmp.ne.s32.totalorder %s119, %s121
      %p128 = scmp.eq.s32.totalorder %s23, 3
      %p129 = por %p127, %p128
      %p130 = scmp.ne.s32.totalorder %s121, %s122
      %p131 = scmp.eq.s32.totalorder %s23, 0
      %p132 = por %p130, %p131
      %p133 = scmp.ne.s32.totalorder %s121, %s122
      %p134 = scmp.eq.s32.totalorder %s24, 3
      %p135 = por %p133, %p134
      %p137 = scmp.ne.s32.totalorder %s122, %s136
      %p138 = scmp.eq.s32.totalorder %s24, 0
      %p139 = por %p137, %p138
      %s141 = sadd.s32 %s140, 1
      %p144 = scmp.eq.s32.totalorder %s18, 3
      %p145 = scmp.ne.s32.totalorder %s140, %s142
      %p146 = scmp.eq.s32.totalorder %s18, 0
      %p147 = por %p145, %p146
      %p148 = scmp.ne.s32.totalorder %s140, %s142
      %p149 = scmp.eq.s32.totalorder %s23, 3
      %p150 = por %p148, %p149
      %p151 = scmp.ne.s32.totalorder %s142, %s143
      %p152 = scmp.eq.s32.totalorder %s23, 0
      %p153 = por %p151, %p152
      %p154 = scmp.ne.s32.totalorder %s142, %s143
      %p155 = scmp.eq.s32.totalorder %s24, 3
      %p156 = por %p154, %p155
      %p158 = scmp.ne.s32.totalorder %s143, %s157
      %p159 = scmp.eq.s32.totalorder %s24, 0
      %p160 = por %p158, %p159
      %s162 = sadd.s32 %s161, 1
      %p165 = scmp.eq.s32.totalorder %s18, 3
      %p166 = scmp.ne.s32.totalorder %s161, %s163
      %p167 = scmp.eq.s32.totalorder %s18, 0
      %p168 = por %p166, %p167
      %p169 = scmp.ne.s32.totalorder %s161, %s163
      %p170 = scmp.eq.s32.totalorder %s23, 3
      %p171 = por %p169, %p170
      %p172 = scmp.ne.s32.totalorder %s163, %s164
      %p173 = scmp.eq.s32.totalorder %s23, 0
      %p174 = por %p172, %p173
      %p175 = scmp.ne.s32.totalorder %s163, %s164
      %p176 = scmp.eq.s32.totalorder %s24, 3
      %p177 = por %p175, %p176
      %p179 = scmp.ne.s32.totalorder %s164, %s178
      %p180 = scmp.eq.s32.totalorder %s24, 0
      %p181 = por %p179, %p180
      %s182 = ssub.s32 %s18, %s25
      %p183 = scmp.eq.s32.totalorder %s182, 0
      %s185 = sadd.s32 %s184, 1
      %s186 = scalar_select %p183, %s184, %s185
      %p189 = pneg %p183
      %p190 = scmp.eq.s32.totalorder %s18, 3
      %p191 = por %p189, %p190
      %p192 = scmp.ne.s32.totalorder %s184, %s187
      %p193 = scmp.eq.s32.totalorder %s18, 0
      %p194 = por %p192, %p193
      %p195 = scmp.ne.s32.totalorder %s184, %s187
      %p196 = scmp.eq.s32.totalorder %s23, 3
      %p197 = por %p195, %p196
      %p198 = scmp.ne.s32.totalorder %s187, %s188
      %p199 = scmp.eq.s32.totalorder %s23, 0
      %p200 = por %p198, %p199
      %p201 = scmp.ne.s32.totalorder %s187, %s188
      %p202 = scmp.eq.s32.totalorder %s24, 3
      %p203 = por %p201, %p202
      %p205 = scmp.ne.s32.totalorder %s188, %s204
      %p206 = scmp.eq.s32.totalorder %s24, 0
      %p207 = por %p205, %p206
      %p208 = scmp.le.s32.totalorder 1, %s18
      %p209 = scmp.lt.s32.totalorder %s18, 5
      %p210 = pnand %p208, %p209
      %p211 = pneg %p210
      // Predicated region
      $region9: #{tpu_custom_call.1} parent=5 // pred_check
        _
      $region10: #{tpu_custom_call.1} parent=5 // pred_check_branch
        %213 = sbr.rel (%p210) target = $region12
      $region11: #{tpu_custom_call.1} parent=5 // pred_region
        %s214 = ssub.s32 %s18, 1
        // Predicated region
        $region13: #{tpu_custom_call.1} parent=11 // pred_check
          %p215 = pneg %p69
        $region14: #{tpu_custom_call.1} parent=11 // pred_check_branch
          %217 = sbr.rel (%p215) target = $region16
        $region15: #{tpu_custom_call.1} parent=11 // pred_region
          _
        $region16: #{tpu_custom_call.1} parent=11 // pred_fallthru
          _
        // Predicated region
        $region17: #{tpu_custom_call.1} parent=11 // pred_check
          %p218 = pneg %p90
        $region18: #{tpu_custom_call.1} parent=11 // pred_check_branch
          %220 = sbr.rel (%p218) target = $region20
        $region19: #{tpu_custom_call.1} parent=11 // pred_region
          _
        $region20: #{tpu_custom_call.1} parent=11 // pred_fallthru
          _
        // Predicated region
        $region21: #{tpu_custom_call.1} parent=11 // pred_check
          %p221 = pneg %p111
        $region22: #{tpu_custom_call.1} parent=11 // pred_check_branch
          %223 = sbr.rel (%p221) target = $region24
        $region23: #{tpu_custom_call.1} parent=11 // pred_region
          _
        $region24: #{tpu_custom_call.1} parent=11 // pred_fallthru
          _
        // Predicated region
        $region25: #{tpu_custom_call.1} parent=11 // pred_check
          %p224 = pneg %p132
        $region26: #{tpu_custom_call.1} parent=11 // pred_check_branch
          %226 = sbr.rel (%p224) target = $region28
        $region27: #{tpu_custom_call.1} parent=11 // pred_region
          _
        $region28: #{tpu_custom_call.1} parent=11 // pred_fallthru
          _
        // Predicated region
        $region29: #{tpu_custom_call.1} parent=11 // pred_check
          %p227 = pneg %p153
        $region30: #{tpu_custom_call.1} parent=11 // pred_check_branch
          %229 = sbr.rel (%p227) target = $region32
        $region31: #{tpu_custom_call.1} parent=11 // pred_region
          _
        $region32: #{tpu_custom_call.1} parent=11 // pred_fallthru
          _
        // Predicated region
        $region33: #{tpu_custom_call.1} parent=11 // pred_check
          %p230 = pneg %p174
        $region34: #{tpu_custom_call.1} parent=11 // pred_check_branch
          %232 = sbr.rel (%p230) target = $region36
        $region35: #{tpu_custom_call.1} parent=11 // pred_region
          _
        $region36: #{tpu_custom_call.1} parent=11 // pred_fallthru
          _
      $region12: #{tpu_custom_call.1} parent=5 // pred_fallthru
        _
      %p233 = scmp.lt.s32.totalorder %s18, 4
      // Predicated region
      $region37: #{tpu_custom_call.1} parent=5 // pred_check
        %p234 = pneg %p233
      $region38: #{tpu_custom_call.1} parent=5 // pred_check_branch
        %236 = sbr.rel (%p234) target = $region40
      $region39: #{tpu_custom_call.1} parent=5 // pred_region
        // Predicated region
        $region41: #{tpu_custom_call.1} parent=39 // pred_check
          %p237 = pneg %p42
        $region42: #{tpu_custom_call.1} parent=39 // pred_check_branch
          %239 = sbr.rel (%p237) target = $region44
        $region43: #{tpu_custom_call.1} parent=39 // pred_region
          %s240 = sld [smem:[#allocation3]]
          %s241 = sadd.s32 %s240, %s18
          %s242 = smul.u32 64, %s241
          %p243 = scmp.lt.s32.totalorder %s242, 511
          %s244 = scalar_select %p243, %s242, 511
          %s245 = smul.addr %s244, 2
          %s246 = smul.addr %s245, 4
          %s247 = scalar_lea.vmem %s1, %s246
          %s248 = sld [smem:[#allocation3]]
          %s249 = sadd.s32 %s248, %s18
          %s250 = smul.u32 64, %s249
        $region44: #{tpu_custom_call.1} parent=39 // pred_fallthru
          _
      $region40: #{tpu_custom_call.1} parent=5 // pred_fallthru
        _
      %p251 = scmp.le.s32.totalorder 1, %s18
      %p252 = scmp.lt.s32.totalorder %s18, 5
      %p253 = pnand %p251, %p252
      %p254 = pneg %p253
      // Predicated region
      $region45: #{tpu_custom_call.1} parent=5 // pred_check
        _
      $region46: #{tpu_custom_call.1} parent=5 // pred_check_branch
        %256 = sbr.rel (%p253) target = $region48
      $region47: #{tpu_custom_call.1} parent=5 // pred_region
        %s257 = ssub.s32 %s18, 1
        %s258 = sld [smem:[#allocation3]]
        %s259 = sadd.s32 %s258, %s23
        %s260 = smul.u32 64, %s259
        %p261 = scmp.lt.s32.totalorder %s260, 511
        %s262 = scalar_select %p261, %s260, 511
        %s263 = smul.addr %s262, 2
        %s264 = smul.addr %s263, 4
        %s265 = scalar_lea.vmem %s1, %s264
        %p266 = pneg %p48
        %p267 = pneg %p45
        %p268 = pneg %p69
        %p269 = pneg %p66
        %p270 = pneg %p90
        %p271 = pneg %p87
        %p272 = pneg %p111
        %p273 = pneg %p108
        %p274 = pneg %p132
        %p275 = pneg %p129
        %p276 = pneg %p153
        %p277 = pneg %p150
        %p278 = pneg %p174
        %p279 = pneg %p171
        %p280 = pneg %p200
        %p281 = pneg %p197
        %s282 = sand.u32 %s187, 1
        %s283 = scalar_lea.sflag [#allocation5], %s282
        %s284 = sand.u32 %s187, 1
        %s285 = smul.addr %s284, 512
        %s286 = scalar_lea.vmem [#allocation4], %s285
        %s287 = sld [smem:[#allocation3]]
        %s288 = sadd.s32 %s287, %s23
        %s289 = smul.u32 64, %s288
        %p290 = scmp.lt.s32.totalorder %s289, 511
        %s291 = scalar_select %p290, %s289, 511
        %s292 = smul.addr %s291, 2
        %s293 = smul.addr %s292, 4
        %s294 = scalar_lea.vmem %s1, %s293
        %s295 = sld [smem:[#allocation3]]
        %s296 = sadd.s32 %s295, %s23
        %s297 = smul.u32 64, %s296
        %s298 = smul.u32 64, %s23
        %v300 = vld [vmem:[%s294] sm:$0xff]
        %v301 = vld [vmem:[%s294 + $0x8] sm:$0xff]
        %v302 = vld [vmem:[%s294 + $0x10] sm:$0xff]
        %v303 = vld [vmem:[%s294 + $0x18] sm:$0xff]
        %v304 = vld [vmem:[%s294 + $0x20] sm:$0xff]
        %v305 = vld [vmem:[%s294 + $0x28] sm:$0xff]
        %v306 = vld [vmem:[%s294 + $0x30] sm:$0xff]
        %v307 = vld [vmem:[%s294 + $0x38] sm:$0xff]
        %v308 = vld [vmem:[%s294 + $0x40] sm:$0xff]
        %v309 = vld [vmem:[%s294 + $0x48] sm:$0xff]
        %v310 = vld [vmem:[%s294 + $0x50] sm:$0xff]
        %v311 = vld [vmem:[%s294 + $0x58] sm:$0xff]
        %v312 = vld [vmem:[%s294 + $0x60] sm:$0xff]
        %v313 = vld [vmem:[%s294 + $0x68] sm:$0xff]
        %v314 = vld [vmem:[%s294 + $0x70] sm:$0xff]
        %v315 = vld [vmem:[%s294 + $0x78] sm:$0xff]
        %v316 = vld [vmem:[%s294 + $0x80] sm:$0xff]
        %v317 = vld [vmem:[%s294 + $0x88] sm:$0xff]
        %v318 = vld [vmem:[%s294 + $0x90] sm:$0xff]
        %v319 = vld [vmem:[%s294 + $0x98] sm:$0xff]
        %v320 = vld [vmem:[%s294 + $0xa0] sm:$0xff]
        %v321 = vld [vmem:[%s294 + $0xa8] sm:$0xff]
        %v322 = vld [vmem:[%s294 + $0xb0] sm:$0xff]
        %v323 = vld [vmem:[%s294 + $0xb8] sm:$0xff]
        %v324 = vld [vmem:[%s294 + $0xc0] sm:$0xff]
        %v325 = vld [vmem:[%s294 + $0xc8] sm:$0xff]
        %v326 = vld [vmem:[%s294 + $0xd0] sm:$0xff]
        %v327 = vld [vmem:[%s294 + $0xd8] sm:$0xff]
        %v328 = vld [vmem:[%s294 + $0xe0] sm:$0xff]
        %v329 = vld [vmem:[%s294 + $0xe8] sm:$0xff]
        %v330 = vld [vmem:[%s294 + $0xf0] sm:$0xff]
        %v331 = vld [vmem:[%s294 + $0xf8] sm:$0xff]
        %v332 = vld [vmem:[%s294 + $0x100] sm:$0xff]
        %v333 = vld [vmem:[%s294 + $0x108] sm:$0xff]
        %v334 = vld [vmem:[%s294 + $0x110] sm:$0xff]
        %v335 = vld [vmem:[%s294 + $0x118] sm:$0xff]
        %v336 = vld [vmem:[%s294 + $0x120] sm:$0xff]
        %v337 = vld [vmem:[%s294 + $0x128] sm:$0xff]
        %v338 = vld [vmem:[%s294 + $0x130] sm:$0xff]
        %v339 = vld [vmem:[%s294 + $0x138] sm:$0xff]
        %v340 = vld [vmem:[%s294 + $0x140] sm:$0xff]
        %v341 = vld [vmem:[%s294 + $0x148] sm:$0xff]
        %v342 = vld [vmem:[%s294 + $0x150] sm:$0xff]
        %v343 = vld [vmem:[%s294 + $0x158] sm:$0xff]
        %v344 = vld [vmem:[%s294 + $0x160] sm:$0xff]
        %v345 = vld [vmem:[%s294 + $0x168] sm:$0xff]
        %v346 = vld [vmem:[%s294 + $0x170] sm:$0xff]
        %v347 = vld [vmem:[%s294 + $0x178] sm:$0xff]
        %v348 = vld [vmem:[%s294 + $0x180] sm:$0xff]
        %v349 = vld [vmem:[%s294 + $0x188] sm:$0xff]
        %v350 = vld [vmem:[%s294 + $0x190] sm:$0xff]
        %v351 = vld [vmem:[%s294 + $0x198] sm:$0xff]
        %v352 = vld [vmem:[%s294 + $0x1a0] sm:$0xff]
        %v353 = vld [vmem:[%s294 + $0x1a8] sm:$0xff]
        %v354 = vld [vmem:[%s294 + $0x1b0] sm:$0xff]
        %v355 = vld [vmem:[%s294 + $0x1b8] sm:$0xff]
        %v356 = vld [vmem:[%s294 + $0x1c0] sm:$0xff]
        %v357 = vld [vmem:[%s294 + $0x1c8] sm:$0xff]
        %v358 = vld [vmem:[%s294 + $0x1d0] sm:$0xff]
        %v359 = vld [vmem:[%s294 + $0x1d8] sm:$0xff]
        %v360 = vld [vmem:[%s294 + $0x1e0] sm:$0xff]
        %v361 = vld [vmem:[%s294 + $0x1e8] sm:$0xff]
        %v362 = vld [vmem:[%s294 + $0x1f0] sm:$0xff]
        %v363 = vld [vmem:[%s294 + $0x1f8] sm:$0xff]
        %v364 = vld [vmem:[%s2] sm:$0xf]
        %v365 = vld [vmem:[%s2 + $0x4] sm:$0xf]
        %v366 = vld [vmem:[%s2 + $0x8] sm:$0xf]
        %v367 = vld [vmem:[%s2 + $0xc] sm:$0xf]
        %v368 = vld [vmem:[%s2 + $0x10] sm:$0xf]
        %v369 = vld [vmem:[%s2 + $0x14] sm:$0xf]
        %v370 = vld [vmem:[%s2 + $0x18] sm:$0xf]
        %v371 = vld [vmem:[%s2 + $0x1c] sm:$0xf]
        %v372 = vld [vmem:[%s2 + $0x20] sm:$0xf]
        %v373 = vld [vmem:[%s2 + $0x24] sm:$0xf]
        %v374 = vld [vmem:[%s2 + $0x28] sm:$0xf]
        %v375 = vld [vmem:[%s2 + $0x2c] sm:$0xf]
        %v376 = vld [vmem:[%s2 + $0x30] sm:$0xf]
        %v377 = vld [vmem:[%s2 + $0x34] sm:$0xf]
        %v378 = vld [vmem:[%s2 + $0x38] sm:$0xf]
        %v379 = vld [vmem:[%s2 + $0x3c] sm:$0xf]
        %v380 = vld [vmem:[%s2 + $0x40] sm:$0xf]
        %v381 = vld [vmem:[%s2 + $0x44] sm:$0xf]
        %v382 = vld [vmem:[%s2 + $0x48] sm:$0xf]
        %v383 = vld [vmem:[%s2 + $0x4c] sm:$0xf]
        %v384 = vld [vmem:[%s3] sm:$0x1]
        %v386 = vlaneseq
        %v387 = vshrl.u32 %v386, 7
        %v388 = vsub.s32 0, %v387
        %v389 = vrot.slane %v384, %v388
        %v455 = vunpack.c.l.b16 %v300
        %v456 = vunpack.c.h.b16 %v300
        %v457 = vunpack.c.l.b16 %v301
        %v458 = vunpack.c.h.b16 %v301
        %v459 = vunpack.c.l.b16 %v302
        %v460 = vunpack.c.h.b16 %v302
        %v461 = vunpack.c.l.b16 %v303
        %v462 = vunpack.c.h.b16 %v303
        %v463 = vunpack.c.l.b16 %v304
        %v464 = vunpack.c.h.b16 %v304
        %v465 = vunpack.c.l.b16 %v305
        %v466 = vunpack.c.h.b16 %v305
        %v467 = vunpack.c.l.b16 %v306
        %v468 = vunpack.c.h.b16 %v306
        %v469 = vunpack.c.l.b16 %v307
        %v470 = vunpack.c.h.b16 %v307
        %v471 = vunpack.c.l.b16 %v308
        %v472 = vunpack.c.h.b16 %v308
        %v473 = vunpack.c.l.b16 %v309
        %v474 = vunpack.c.h.b16 %v309
        %v475 = vunpack.c.l.b16 %v310
        %v476 = vunpack.c.h.b16 %v310
        %v477 = vunpack.c.l.b16 %v311
        %v478 = vunpack.c.h.b16 %v311
        %v479 = vunpack.c.l.b16 %v312
        %v480 = vunpack.c.h.b16 %v312
        %v481 = vunpack.c.l.b16 %v313
        %v482 = vunpack.c.h.b16 %v313
        %v483 = vunpack.c.l.b16 %v314
        %v484 = vunpack.c.h.b16 %v314
        %v485 = vunpack.c.l.b16 %v315
        %v486 = vunpack.c.h.b16 %v315
        %v487 = vunpack.c.l.b16 %v316
        %v488 = vunpack.c.h.b16 %v316
        %v489 = vunpack.c.l.b16 %v317
        %v490 = vunpack.c.h.b16 %v317
        %v491 = vunpack.c.l.b16 %v318
        %v492 = vunpack.c.h.b16 %v318
        %v493 = vunpack.c.l.b16 %v319
        %v494 = vunpack.c.h.b16 %v319
        %v495 = vunpack.c.l.b16 %v320
        %v496 = vunpack.c.h.b16 %v320
        %v497 = vunpack.c.l.b16 %v321
        %v498 = vunpack.c.h.b16 %v321
        %v499 = vunpack.c.l.b16 %v322
        %v500 = vunpack.c.h.b16 %v322
        %v501 = vunpack.c.l.b16 %v323
        %v502 = vunpack.c.h.b16 %v323
        %v503 = vunpack.c.l.b16 %v324
        %v504 = vunpack.c.h.b16 %v324
        %v505 = vunpack.c.l.b16 %v325
        %v506 = vunpack.c.h.b16 %v325
        %v507 = vunpack.c.l.b16 %v326
        %v508 = vunpack.c.h.b16 %v326
        %v509 = vunpack.c.l.b16 %v327
        %v510 = vunpack.c.h.b16 %v327
        %v511 = vunpack.c.l.b16 %v328
        %v512 = vunpack.c.h.b16 %v328
        %v513 = vunpack.c.l.b16 %v329
        %v514 = vunpack.c.h.b16 %v329
        %v515 = vunpack.c.l.b16 %v330
        %v516 = vunpack.c.h.b16 %v330
        %v517 = vunpack.c.l.b16 %v331
        %v518 = vunpack.c.h.b16 %v331
        %v519 = vunpack.c.l.b16 %v332
        %v520 = vunpack.c.h.b16 %v332
        %v521 = vunpack.c.l.b16 %v333
        %v522 = vunpack.c.h.b16 %v333
        %v523 = vunpack.c.l.b16 %v334
        %v524 = vunpack.c.h.b16 %v334
        %v525 = vunpack.c.l.b16 %v335
        %v526 = vunpack.c.h.b16 %v335
        %v527 = vunpack.c.l.b16 %v336
        %v528 = vunpack.c.h.b16 %v336
        %v529 = vunpack.c.l.b16 %v337
        %v530 = vunpack.c.h.b16 %v337
        %v531 = vunpack.c.l.b16 %v338
        %v532 = vunpack.c.h.b16 %v338
        %v533 = vunpack.c.l.b16 %v339
        %v534 = vunpack.c.h.b16 %v339
        %v535 = vunpack.c.l.b16 %v340
        %v536 = vunpack.c.h.b16 %v340
        %v537 = vunpack.c.l.b16 %v341
        %v538 = vunpack.c.h.b16 %v341
        %v539 = vunpack.c.l.b16 %v342
        %v540 = vunpack.c.h.b16 %v342
        %v541 = vunpack.c.l.b16 %v343
        %v542 = vunpack.c.h.b16 %v343
        %v543 = vunpack.c.l.b16 %v344
        %v544 = vunpack.c.h.b16 %v344
        %v545 = vunpack.c.l.b16 %v345
        %v546 = vunpack.c.h.b16 %v345
        %v547 = vunpack.c.l.b16 %v346
        %v548 = vunpack.c.h.b16 %v346
        %v549 = vunpack.c.l.b16 %v347
        %v550 = vunpack.c.h.b16 %v347
        %v551 = vunpack.c.l.b16 %v348
        %v552 = vunpack.c.h.b16 %v348
        %v553 = vunpack.c.l.b16 %v349
        %v554 = vunpack.c.h.b16 %v349
        %v555 = vunpack.c.l.b16 %v350
        %v556 = vunpack.c.h.b16 %v350
        %v557 = vunpack.c.l.b16 %v351
        %v558 = vunpack.c.h.b16 %v351
        %v559 = vunpack.c.l.b16 %v352
        %v560 = vunpack.c.h.b16 %v352
        %v561 = vunpack.c.l.b16 %v353
        %v562 = vunpack.c.h.b16 %v353
        %v563 = vunpack.c.l.b16 %v354
        %v564 = vunpack.c.h.b16 %v354
        %v565 = vunpack.c.l.b16 %v355
        %v566 = vunpack.c.h.b16 %v355
        %v567 = vunpack.c.l.b16 %v356
        %v568 = vunpack.c.h.b16 %v356
        %v569 = vunpack.c.l.b16 %v357
        %v570 = vunpack.c.h.b16 %v357
        %v571 = vunpack.c.l.b16 %v358
        %v572 = vunpack.c.h.b16 %v358
        %v573 = vunpack.c.l.b16 %v359
        %v574 = vunpack.c.h.b16 %v359
        %v575 = vunpack.c.l.b16 %v360
        %v576 = vunpack.c.h.b16 %v360
        %v577 = vunpack.c.l.b16 %v361
        %v578 = vunpack.c.h.b16 %v361
        %v579 = vunpack.c.l.b16 %v362
        %v580 = vunpack.c.h.b16 %v362
        %v581 = vunpack.c.l.b16 %v363
        %v582 = vunpack.c.h.b16 %v363
        %v583 = vpack.c.b16 %v457, %v455
        %v584 = vpack.c.b16 %v458, %v456
        %v585 = vpack.c.b16 %v461, %v459
        %v586 = vpack.c.b16 %v462, %v460
        %v587 = vpack.c.b16 %v465, %v463
        %v588 = vpack.c.b16 %v466, %v464
        %v589 = vpack.c.b16 %v469, %v467
        %v590 = vpack.c.b16 %v470, %v468
        %v591 = vpack.c.b16 %v473, %v471
        %v592 = vpack.c.b16 %v474, %v472
        %v593 = vpack.c.b16 %v477, %v475
        %v594 = vpack.c.b16 %v478, %v476
        %v595 = vpack.c.b16 %v481, %v479
        %v596 = vpack.c.b16 %v482, %v480
        %v597 = vpack.c.b16 %v485, %v483
        %v598 = vpack.c.b16 %v486, %v484
        %v599 = vpack.c.b16 %v489, %v487
        %v600 = vpack.c.b16 %v490, %v488
        %v601 = vpack.c.b16 %v493, %v491
        %v602 = vpack.c.b16 %v494, %v492
        %v603 = vpack.c.b16 %v497, %v495
        %v604 = vpack.c.b16 %v498, %v496
        %v605 = vpack.c.b16 %v501, %v499
        %v606 = vpack.c.b16 %v502, %v500
        %v607 = vpack.c.b16 %v505, %v503
        %v608 = vpack.c.b16 %v506, %v504
        %v609 = vpack.c.b16 %v509, %v507
        %v610 = vpack.c.b16 %v510, %v508
        %v611 = vpack.c.b16 %v513, %v511
        %v612 = vpack.c.b16 %v514, %v512
        %v613 = vpack.c.b16 %v517, %v515
        %v614 = vpack.c.b16 %v518, %v516
        %v615 = vpack.c.b16 %v521, %v519
        %v616 = vpack.c.b16 %v522, %v520
        %v617 = vpack.c.b16 %v525, %v523
        %v618 = vpack.c.b16 %v526, %v524
        %v619 = vpack.c.b16 %v529, %v527
        %v620 = vpack.c.b16 %v530, %v528
        %v621 = vpack.c.b16 %v533, %v531
        %v622 = vpack.c.b16 %v534, %v532
        %v623 = vpack.c.b16 %v537, %v535
        %v624 = vpack.c.b16 %v538, %v536
        %v625 = vpack.c.b16 %v541, %v539
        %v626 = vpack.c.b16 %v542, %v540
        %v627 = vpack.c.b16 %v545, %v543
        %v628 = vpack.c.b16 %v546, %v544
        %v629 = vpack.c.b16 %v549, %v547
        %v630 = vpack.c.b16 %v550, %v548
        %v631 = vpack.c.b16 %v553, %v551
        %v632 = vpack.c.b16 %v554, %v552
        %v633 = vpack.c.b16 %v557, %v555
        %v634 = vpack.c.b16 %v558, %v556
        %v635 = vpack.c.b16 %v561, %v559
        %v636 = vpack.c.b16 %v562, %v560
        %v637 = vpack.c.b16 %v565, %v563
        %v638 = vpack.c.b16 %v566, %v564
        %v639 = vpack.c.b16 %v569, %v567
        %v640 = vpack.c.b16 %v570, %v568
        %v641 = vpack.c.b16 %v573, %v571
        %v642 = vpack.c.b16 %v574, %v572
        %v643 = vpack.c.b16 %v577, %v575
        %v644 = vpack.c.b16 %v578, %v576
        %v645 = vpack.c.b16 %v581, %v579
        %v646 = vpack.c.b16 %v582, %v580
        %v699 = vunpack.c.l.b16 %v364
        %v700 = vunpack.c.l.b16 %v365
        %v701 = vunpack.c.l.b16 %v366
        %v702 = vunpack.c.l.b16 %v367
        %v703 = vunpack.c.l.b16 %v368
        %v704 = vunpack.c.l.b16 %v369
        %v705 = vunpack.c.l.b16 %v370
        %v706 = vunpack.c.l.b16 %v371
        %v707 = vunpack.c.l.b16 %v372
        %v708 = vunpack.c.l.b16 %v373
        %v709 = vunpack.c.l.b16 %v374
        %v710 = vunpack.c.l.b16 %v375
        %v711 = vunpack.c.l.b16 %v376
        %v712 = vunpack.c.l.b16 %v377
        %v713 = vunpack.c.l.b16 %v378
        %v714 = vunpack.c.l.b16 %v379
        %v715 = vunpack.c.l.b16 %v380
        %v716 = vunpack.c.l.b16 %v381
        %v717 = vunpack.c.l.b16 %v382
        %v718 = vunpack.c.l.b16 %v383
        %v719 = vpack.c.b16 %v700, %v699
        %v720 = vpack.c.b16 %v702, %v701
        %v721 = vpack.c.b16 %v704, %v703
        %v722 = vpack.c.b16 %v706, %v705
        %v723 = vpack.c.b16 %v708, %v707
        %v724 = vpack.c.b16 %v710, %v709
        %v725 = vpack.c.b16 %v712, %v711
        %v726 = vpack.c.b16 %v714, %v713
        %v727 = vpack.c.b16 %v716, %v715
        %v728 = vpack.c.b16 %v718, %v717
        %vm739 = vcmask 261120
        %v741 = vsel %vm739, %v584, 0
        %v744 = vsel %vm739, %v586, 0
        %v747 = vsel %vm739, %v588, 0
        %v750 = vsel %vm739, %v590, 0
        %v753 = vsel %vm739, %v592, 0
        %v756 = vsel %vm739, %v594, 0
        %v759 = vsel %vm739, %v596, 0
        %v762 = vsel %vm739, %v598, 0
        %v765 = vsel %vm739, %v600, 0
        %v768 = vsel %vm739, %v602, 0
        %v771 = vsel %vm739, %v604, 0
        %v774 = vsel %vm739, %v606, 0
        %v777 = vsel %vm739, %v608, 0
        %v780 = vsel %vm739, %v610, 0
        %v783 = vsel %vm739, %v612, 0
        %v786 = vsel %vm739, %v614, 0
        %v789 = vsel %vm739, %v616, 0
        %v792 = vsel %vm739, %v618, 0
        %v795 = vsel %vm739, %v620, 0
        %v798 = vsel %vm739, %v622, 0
        %v801 = vsel %vm739, %v624, 0
        %v804 = vsel %vm739, %v626, 0
        %v807 = vsel %vm739, %v628, 0
        %v810 = vsel %vm739, %v630, 0
        %v813 = vsel %vm739, %v632, 0
        %v816 = vsel %vm739, %v634, 0
        %v819 = vsel %vm739, %v636, 0
        %v822 = vsel %vm739, %v638, 0
        %v825 = vsel %vm739, %v640, 0
        %v828 = vsel %vm739, %v642, 0
        %v831 = vsel %vm739, %v644, 0
        %v834 = vsel %vm739, %v646, 0
        %836 = vmatprep.subr.bf16.mxu0 0
        %837 = vmatpush1.bf16.msra.mxu0 %v719
        %838 = vmatprep.subr.bf16.mxu0 0
        %839 = vmatpush1.bf16.msra.mxu0 %v720
        %840 = vmatprep.subr.bf16.mxu0 0
        %841 = vmatpush1.bf16.msra.mxu0 %v721
        %842 = vmatprep.subr.bf16.mxu0 0
        %843 = vmatpush1.bf16.msra.mxu0 %v722
        %844 = vmatprep.subr.bf16.mxu0 0
        %845 = vmatpush1.bf16.msra.mxu0 %v723
        %846 = vmatprep.subr.bf16.mxu0 0
        %847 = vmatpush1.bf16.msra.mxu0 %v724
        %848 = vmatprep.subr.bf16.mxu0 0
        %849 = vmatpush1.bf16.msra.mxu0 %v725
        %850 = vmatprep.subr.bf16.mxu0 0
        %851 = vmatpush1.bf16.msra.mxu0 %v726
        %852 = vmatprep.subr.bf16.mxu0 0
        %853 = vmatpush1.bf16.msra.mxu0 %v727
        %854 = vmatprep.subr.bf16.mxu0 0
        %855 = vmatpush1.bf16.msra.mxu0 %v728
        %856 = vmatprep.subr.bf16.mxu0 0
        %857 = vmatpush1.bf16.msra.mxu0 0
        %858 = vmatprep.subr.bf16.mxu0 0
        %859 = vmatpush1.bf16.msra.mxu0 0
        %860 = vmatprep.subr.bf16.mxu0 0
        %861 = vmatpush1.bf16.msra.mxu0 0
        %862 = vmatprep.subr.bf16.mxu0 0
        %863 = vmatpush1.bf16.msra.mxu0 0
        %864 = vmatprep.subr.bf16.mxu0 0
        %865 = vmatpush1.bf16.msra.mxu0 0
        %866 = vmatprep.subr.bf16.mxu0 0
        %867 = vmatpush1.bf16.msra.mxu0 0
        %868 = vmatprep.mubr.bf16.mxu0 %v741
        %869 = vmatmul.mubr.bf16.gmra.mrb[0].mxu0 %v583
        %v870 = vpop.f32.mrb[0].mxu0
        %v871 = vadd.f32 %v389, %v870
        %v872 = vpop.f32.mrb[0].mxu0
        %v873 = vpop.f32.mrb[0].mxu0
        %v874 = vadd.f32 %v389, %v873
        %v875 = vpop.f32.mrb[0].mxu0
        %876 = vmatprep.mubr.bf16.mxu0 %v744
        %877 = vmatmul.mubr.bf16.gmra.mrb[0].mxu0 %v585
        %v878 = vpop.f32.mrb[0].mxu0
        %v879 = vadd.f32 %v389, %v878
        %v880 = vpop.f32.mrb[0].mxu0
        %v881 = vpop.f32.mrb[0].mxu0
        %v882 = vadd.f32 %v389, %v881
        %v883 = vpop.f32.mrb[0].mxu0
        %884 = vmatprep.mubr.bf16.mxu0 %v747
        %885 = vmatmul.mubr.bf16.gmra.mrb[0].mxu0 %v587
        %v886 = vpop.f32.mrb[0].mxu0
        %v887 = vadd.f32 %v389, %v886
        %v888 = vpop.f32.mrb[0].mxu0
        %v889 = vpop.f32.mrb[0].mxu0
        %v890 = vadd.f32 %v389, %v889
        %v891 = vpop.f32.mrb[0].mxu0
        %892 = vmatprep.mubr.bf16.mxu0 %v750
        %893 = vmatmul.mubr.bf16.gmra.mrb[0].mxu0 %v589
        %v894 = vpop.f32.mrb[0].mxu0
        %v895 = vadd.f32 %v389, %v894
        %v896 = vpop.f32.mrb[0].mxu0
        %v897 = vpop.f32.mrb[0].mxu0
        %v898 = vadd.f32 %v389, %v897
        %v899 = vpop.f32.mrb[0].mxu0
        %900 = vmatprep.mubr.bf16.mxu0 %v753
        %901 = vmatmul.mubr.bf16.gmra.mrb[0].mxu0 %v591
        %v902 = vpop.f32.mrb[0].mxu0
        %v903 = vadd.f32 %v389, %v902
        %v904 = vpop.f32.mrb[0].mxu0
        %v905 = vpop.f32.mrb[0].mxu0
        %v906 = vadd.f32 %v389, %v905
        %v907 = vpop.f32.mrb[0].mxu0
        %908 = vmatprep.mubr.bf16.mxu0 %v756
        %909 = vmatmul.mubr.bf16.gmra.mrb[0].mxu0 %v593
        %v910 = vpop.f32.mrb[0].mxu0
        %v911 = vadd.f32 %v389, %v910
        %v912 = vpop.f32.mrb[0].mxu0
        %v913 = vpop.f32.mrb[0].mxu0
        %v914 = vadd.f32 %v389, %v913
        %v915 = vpop.f32.mrb[0].mxu0
        %916 = vmatprep.mubr.bf16.mxu0 %v759
        %917 = vmatmul.mubr.bf16.gmra.mrb[0].mxu0 %v595
        %v918 = vpop.f32.mrb[0].mxu0
        %v919 = vadd.f32 %v389, %v918
        %v920 = vpop.f32.mrb[0].mxu0
        %v921 = vpop.f32.mrb[0].mxu0
        %v922 = vadd.f32 %v389, %v921
        %v923 = vpop.f32.mrb[0].mxu0
        %924 = vmatprep.mubr.bf16.mxu0 %v762
        %925 = vmatmul.mubr.bf16.gmra.mrb[0].mxu0 %v597
        %v926 = vpop.f32.mrb[0].mxu0
        %v927 = vadd.f32 %v389, %v926
        %v928 = vpop.f32.mrb[0].mxu0
        %v929 = vpop.f32.mrb[0].mxu0
        %v930 = vadd.f32 %v389, %v929
        %v931 = vpop.f32.mrb[0].mxu0
        %932 = vmatprep.mubr.bf16.mxu0 %v765
        %933 = vmatmul.mubr.bf16.gmra.mrb[0].mxu0 %v599
        %v934 = vpop.f32.mrb[0].mxu0
        %v935 = vadd.f32 %v389, %v934
        %v936 = vpop.f32.mrb[0].mxu0
        %v937 = vpop.f32.mrb[0].mxu0
        %v938 = vadd.f32 %v389, %v937
        %v939 = vpop.f32.mrb[0].mxu0
        %940 = vmatprep.mubr.bf16.mxu0 %v768
        %941 = vmatmul.mubr.bf16.gmra.mrb[0].mxu0 %v601
        %v942 = vpop.f32.mrb[0].mxu0
        %v943 = vadd.f32 %v389, %v942
        %v944 = vpop.f32.mrb[0].mxu0
        %v945 = vpop.f32.mrb[0].mxu0
        %v946 = vadd.f32 %v389, %v945
        %v947 = vpop.f32.mrb[0].mxu0
        %948 = vmatprep.mubr.bf16.mxu0 %v771
        %949 = vmatmul.mubr.bf16.gmra.mrb[0].mxu0 %v603
        %v950 = vpop.f32.mrb[0].mxu0
        %v951 = vadd.f32 %v389, %v950
        %v952 = vpop.f32.mrb[0].mxu0
        %v953 = vpop.f32.mrb[0].mxu0
        %v954 = vadd.f32 %v389, %v953
        %v955 = vpop.f32.mrb[0].mxu0
        %956 = vmatprep.mubr.bf16.mxu0 %v774
        %957 = vmatmul.mubr.bf16.gmra.mrb[0].mxu0 %v605
        %v958 = vpop.f32.mrb[0].mxu0
        %v959 = vadd.f32 %v389, %v958
        %v960 = vpop.f32.mrb[0].mxu0
        %v961 = vpop.f32.mrb[0].mxu0
        %v962 = vadd.f32 %v389, %v961
        %v963 = vpop.f32.mrb[0].mxu0
        %964 = vmatprep.mubr.bf16.mxu0 %v777
        %965 = vmatmul.mubr.bf16.gmra.mrb[0].mxu0 %v607
        %v966 = vpop.f32.mrb[0].mxu0
        %v967 = vadd.f32 %v389, %v966
        %v968 = vpop.f32.mrb[0].mxu0
        %v969 = vpop.f32.mrb[0].mxu0
        %v970 = vadd.f32 %v389, %v969
        %v971 = vpop.f32.mrb[0].mxu0
        %972 = vmatprep.mubr.bf16.mxu0 %v780
        %973 = vmatmul.mubr.bf16.gmra.mrb[0].mxu0 %v609
        %v974 = vpop.f32.mrb[0].mxu0
        %v975 = vadd.f32 %v389, %v974
        %v976 = vpop.f32.mrb[0].mxu0
        %v977 = vpop.f32.mrb[0].mxu0
        %v978 = vadd.f32 %v389, %v977
        %v979 = vpop.f32.mrb[0].mxu0
        %980 = vmatprep.mubr.bf16.mxu0 %v783
        %981 = vmatmul.mubr.bf16.gmra.mrb[0].mxu0 %v611
        %v982 = vpop.f32.mrb[0].mxu0
        %v983 = vadd.f32 %v389, %v982
        %v984 = vpop.f32.mrb[0].mxu0
        %v985 = vpop.f32.mrb[0].mxu0
        %v986 = vadd.f32 %v389, %v985
        %v987 = vpop.f32.mrb[0].mxu0
        %988 = vmatprep.mubr.bf16.mxu0 %v786
        %989 = vmatmul.mubr.bf16.gmra.mrb[0].mxu0 %v613
        %v990 = vpop.f32.mrb[0].mxu0
        %v991 = vadd.f32 %v389, %v990
        %v992 = vpop.f32.mrb[0].mxu0
        %v993 = vpop.f32.mrb[0].mxu0
        %v994 = vadd.f32 %v389, %v993
        %v995 = vpop.f32.mrb[0].mxu0
        %996 = vmatprep.mubr.bf16.mxu0 %v789
        %997 = vmatmul.mubr.bf16.gmra.mrb[0].mxu0 %v615
        %v998 = vpop.f32.mrb[0].mxu0
        %v999 = vadd.f32 %v389, %v998
        %v1000 = vpop.f32.mrb[0].mxu0
        %v1001 = vpop.f32.mrb[0].mxu0
        %v1002 = vadd.f32 %v389, %v1001
        %v1003 = vpop.f32.mrb[0].mxu0
        %1004 = vmatprep.mubr.bf16.mxu0 %v792
        %1005 = vmatmul.mubr.bf16.gmra.mrb[0].mxu0 %v617
        %v1006 = vpop.f32.mrb[0].mxu0
        %v1007 = vadd.f32 %v389, %v1006
        %v1008 = vpop.f32.mrb[0].mxu0
        %v1009 = vpop.f32.mrb[0].mxu0
        %v1010 = vadd.f32 %v389, %v1009
        %v1011 = vpop.f32.mrb[0].mxu0
        %1012 = vmatprep.mubr.bf16.mxu0 %v795
        %1013 = vmatmul.mubr.bf16.gmra.mrb[0].mxu0 %v619
        %v1014 = vpop.f32.mrb[0].mxu0
        %v1015 = vadd.f32 %v389, %v1014
        %v1016 = vpop.f32.mrb[0].mxu0
        %v1017 = vpop.f32.mrb[0].mxu0
        %v1018 = vadd.f32 %v389, %v1017
        %v1019 = vpop.f32.mrb[0].mxu0
        %1020 = vmatprep.mubr.bf16.mxu0 %v798
        %1021 = vmatmul.mubr.bf16.gmra.mrb[0].mxu0 %v621
        %v1022 = vpop.f32.mrb[0].mxu0
        %v1023 = vadd.f32 %v389, %v1022
        %v1024 = vpop.f32.mrb[0].mxu0
        %v1025 = vpop.f32.mrb[0].mxu0
        %v1026 = vadd.f32 %v389, %v1025
        %v1027 = vpop.f32.mrb[0].mxu0
        %1028 = vmatprep.mubr.bf16.mxu0 %v801
        %1029 = vmatmul.mubr.bf16.gmra.mrb[0].mxu0 %v623
        %v1030 = vpop.f32.mrb[0].mxu0
        %v1031 = vadd.f32 %v389, %v1030
        %v1032 = vpop.f32.mrb[0].mxu0
        %v1033 = vpop.f32.mrb[0].mxu0
        %v1034 = vadd.f32 %v389, %v1033
        %v1035 = vpop.f32.mrb[0].mxu0
        %1036 = vmatprep.mubr.bf16.mxu0 %v804
        %1037 = vmatmul.mubr.bf16.gmra.mrb[0].mxu0 %v625
        %v1038 = vpop.f32.mrb[0].mxu0
        %v1039 = vadd.f32 %v389, %v1038
        %v1040 = vpop.f32.mrb[0].mxu0
        %v1041 = vpop.f32.mrb[0].mxu0
        %v1042 = vadd.f32 %v389, %v1041
        %v1043 = vpop.f32.mrb[0].mxu0
        %1044 = vmatprep.mubr.bf16.mxu0 %v807
        %1045 = vmatmul.mubr.bf16.gmra.mrb[0].mxu0 %v627
        %v1046 = vpop.f32.mrb[0].mxu0
        %v1047 = vadd.f32 %v389, %v1046
        %v1048 = vpop.f32.mrb[0].mxu0
        %v1049 = vpop.f32.mrb[0].mxu0
        %v1050 = vadd.f32 %v389, %v1049
        %v1051 = vpop.f32.mrb[0].mxu0
        %1052 = vmatprep.mubr.bf16.mxu0 %v810
        %1053 = vmatmul.mubr.bf16.gmra.mrb[0].mxu0 %v629
        %v1054 = vpop.f32.mrb[0].mxu0
        %v1055 = vadd.f32 %v389, %v1054
        %v1056 = vpop.f32.mrb[0].mxu0
        %v1057 = vpop.f32.mrb[0].mxu0
        %v1058 = vadd.f32 %v389, %v1057
        %v1059 = vpop.f32.mrb[0].mxu0
        %1060 = vmatprep.mubr.bf16.mxu0 %v813
        %1061 = vmatmul.mubr.bf16.gmra.mrb[0].mxu0 %v631
        %v1062 = vpop.f32.mrb[0].mxu0
        %v1063 = vadd.f32 %v389, %v1062
        %v1064 = vpop.f32.mrb[0].mxu0
        %v1065 = vpop.f32.mrb[0].mxu0
        %v1066 = vadd.f32 %v389, %v1065
        %v1067 = vpop.f32.mrb[0].mxu0
        %1068 = vmatprep.mubr.bf16.mxu0 %v816
        %1069 = vmatmul.mubr.bf16.gmra.mrb[0].mxu0 %v633
        %v1070 = vpop.f32.mrb[0].mxu0
        %v1071 = vadd.f32 %v389, %v1070
        %v1072 = vpop.f32.mrb[0].mxu0
        %v1073 = vpop.f32.mrb[0].mxu0
        %v1074 = vadd.f32 %v389, %v1073
        %v1075 = vpop.f32.mrb[0].mxu0
        %1076 = vmatprep.mubr.bf16.mxu0 %v819
        %1077 = vmatmul.mubr.bf16.gmra.mrb[0].mxu0 %v635
        %v1078 = vpop.f32.mrb[0].mxu0
        %v1079 = vadd.f32 %v389, %v1078
        %v1080 = vpop.f32.mrb[0].mxu0
        %v1081 = vpop.f32.mrb[0].mxu0
        %v1082 = vadd.f32 %v389, %v1081
        %v1083 = vpop.f32.mrb[0].mxu0
        %1084 = vmatprep.mubr.bf16.mxu0 %v822
        %1085 = vmatmul.mubr.bf16.gmra.mrb[0].mxu0 %v637
        %v1086 = vpop.f32.mrb[0].mxu0
        %v1087 = vadd.f32 %v389, %v1086
        %v1088 = vpop.f32.mrb[0].mxu0
        %v1089 = vpop.f32.mrb[0].mxu0
        %v1090 = vadd.f32 %v389, %v1089
        %v1091 = vpop.f32.mrb[0].mxu0
        %1092 = vmatprep.mubr.bf16.mxu0 %v825
        %1093 = vmatmul.mubr.bf16.gmra.mrb[0].mxu0 %v639
        %v1094 = vpop.f32.mrb[0].mxu0
        %v1095 = vadd.f32 %v389, %v1094
        %v1096 = vpop.f32.mrb[0].mxu0
        %v1097 = vpop.f32.mrb[0].mxu0
        %v1098 = vadd.f32 %v389, %v1097
        %v1099 = vpop.f32.mrb[0].mxu0
        %1100 = vmatprep.mubr.bf16.mxu0 %v828
        %1101 = vmatmul.mubr.bf16.gmra.mrb[0].mxu0 %v641
        %v1102 = vpop.f32.mrb[0].mxu0
        %v1103 = vadd.f32 %v389, %v1102
        %v1104 = vpop.f32.mrb[0].mxu0
        %v1105 = vpop.f32.mrb[0].mxu0
        %v1106 = vadd.f32 %v389, %v1105
        %v1107 = vpop.f32.mrb[0].mxu0
        %1108 = vmatprep.mubr.bf16.mxu0 %v831
        %1109 = vmatmul.mubr.bf16.gmra.mrb[0].mxu0 %v643
        %v1110 = vpop.f32.mrb[0].mxu0
        %v1111 = vadd.f32 %v389, %v1110
        %v1112 = vpop.f32.mrb[0].mxu0
        %v1113 = vpop.f32.mrb[0].mxu0
        %v1114 = vadd.f32 %v389, %v1113
        %v1115 = vpop.f32.mrb[0].mxu0
        %1116 = vmatprep.mubr.bf16.mxu0 %v834
        %1117 = vmatmul.mubr.bf16.gmra.mrb[0].mxu0 %v645
        %v1118 = vpop.f32.mrb[0].mxu0
        %v1119 = vadd.f32 %v389, %v1118
        %v1120 = vpop.f32.mrb[0].mxu0
        %v1121 = vpop.f32.mrb[0].mxu0
        %v1122 = vadd.f32 %v389, %v1121
        %v1123 = vpop.f32.mrb[0].mxu0
        %1124 = vdwg.mxu0
        %v1125 = vmax.f32 %v871, 0.0
        %v1126 = vmax.f32 %v874, 0.0
        %v1127 = vmax.f32 %v879, 0.0
        %v1128 = vmax.f32 %v882, 0.0
        %v1129 = vmax.f32 %v887, 0.0
        %v1130 = vmax.f32 %v890, 0.0
        %v1131 = vmax.f32 %v895, 0.0
        %v1132 = vmax.f32 %v898, 0.0
        %v1133 = vmax.f32 %v903, 0.0
        %v1134 = vmax.f32 %v906, 0.0
        %v1135 = vmax.f32 %v911, 0.0
        %v1136 = vmax.f32 %v914, 0.0
        %v1137 = vmax.f32 %v919, 0.0
        %v1138 = vmax.f32 %v922, 0.0
        %v1139 = vmax.f32 %v927, 0.0
        %v1140 = vmax.f32 %v930, 0.0
        %v1141 = vmax.f32 %v935, 0.0
        %v1142 = vmax.f32 %v938, 0.0
        %v1143 = vmax.f32 %v943, 0.0
        %v1144 = vmax.f32 %v946, 0.0
        %v1145 = vmax.f32 %v951, 0.0
        %v1146 = vmax.f32 %v954, 0.0
        %v1147 = vmax.f32 %v959, 0.0
        %v1148 = vmax.f32 %v962, 0.0
        %v1149 = vmax.f32 %v967, 0.0
        %v1150 = vmax.f32 %v970, 0.0
        %v1151 = vmax.f32 %v975, 0.0
        %v1152 = vmax.f32 %v978, 0.0
        %v1153 = vmax.f32 %v983, 0.0
        %v1154 = vmax.f32 %v986, 0.0
        %v1155 = vmax.f32 %v991, 0.0
        %v1156 = vmax.f32 %v994, 0.0
        %v1157 = vmax.f32 %v999, 0.0
        %v1158 = vmax.f32 %v1002, 0.0
        %v1159 = vmax.f32 %v1007, 0.0
        %v1160 = vmax.f32 %v1010, 0.0
        %v1161 = vmax.f32 %v1015, 0.0
        %v1162 = vmax.f32 %v1018, 0.0
        %v1163 = vmax.f32 %v1023, 0.0
        %v1164 = vmax.f32 %v1026, 0.0
        %v1165 = vmax.f32 %v1031, 0.0
        %v1166 = vmax.f32 %v1034, 0.0
        %v1167 = vmax.f32 %v1039, 0.0
        %v1168 = vmax.f32 %v1042, 0.0
        %v1169 = vmax.f32 %v1047, 0.0
        %v1170 = vmax.f32 %v1050, 0.0
        %v1171 = vmax.f32 %v1055, 0.0
        %v1172 = vmax.f32 %v1058, 0.0
        %v1173 = vmax.f32 %v1063, 0.0
        %v1174 = vmax.f32 %v1066, 0.0
        %v1175 = vmax.f32 %v1071, 0.0
        %v1176 = vmax.f32 %v1074, 0.0
        %v1177 = vmax.f32 %v1079, 0.0
        %v1178 = vmax.f32 %v1082, 0.0
        %v1179 = vmax.f32 %v1087, 0.0
        %v1180 = vmax.f32 %v1090, 0.0
        %v1181 = vmax.f32 %v1095, 0.0
        %v1182 = vmax.f32 %v1098, 0.0
        %v1183 = vmax.f32 %v1103, 0.0
        %v1184 = vmax.f32 %v1106, 0.0
        %v1185 = vmax.f32 %v1111, 0.0
        %v1186 = vmax.f32 %v1114, 0.0
        %v1187 = vmax.f32 %v1119, 0.0
        %v1188 = vmax.f32 %v1122, 0.0
        %v1189 = vpack.c.bf16 %v1126, %v1125
        %v1190 = vpack.c.bf16 %v1128, %v1127
        %v1191 = vpack.c.bf16 %v1130, %v1129
        %v1192 = vpack.c.bf16 %v1132, %v1131
        %v1193 = vpack.c.bf16 %v1134, %v1133
        %v1194 = vpack.c.bf16 %v1136, %v1135
        %v1195 = vpack.c.bf16 %v1138, %v1137
        %v1196 = vpack.c.bf16 %v1140, %v1139
        %v1197 = vpack.c.bf16 %v1142, %v1141
        %v1198 = vpack.c.bf16 %v1144, %v1143
        %v1199 = vpack.c.bf16 %v1146, %v1145
        %v1200 = vpack.c.bf16 %v1148, %v1147
        %v1201 = vpack.c.bf16 %v1150, %v1149
        %v1202 = vpack.c.bf16 %v1152, %v1151
        %v1203 = vpack.c.bf16 %v1154, %v1153
        %v1204 = vpack.c.bf16 %v1156, %v1155
        %v1205 = vpack.c.bf16 %v1158, %v1157
        %v1206 = vpack.c.bf16 %v1160, %v1159
        %v1207 = vpack.c.bf16 %v1162, %v1161
        %v1208 = vpack.c.bf16 %v1164, %v1163
        %v1209 = vpack.c.bf16 %v1166, %v1165
        %v1210 = vpack.c.bf16 %v1168, %v1167
        %v1211 = vpack.c.bf16 %v1170, %v1169
        %v1212 = vpack.c.bf16 %v1172, %v1171
        %v1213 = vpack.c.bf16 %v1174, %v1173
        %v1214 = vpack.c.bf16 %v1176, %v1175
        %v1215 = vpack.c.bf16 %v1178, %v1177
        %v1216 = vpack.c.bf16 %v1180, %v1179
        %v1217 = vpack.c.bf16 %v1182, %v1181
        %v1218 = vpack.c.bf16 %v1184, %v1183
        %v1219 = vpack.c.bf16 %v1186, %v1185
        %v1220 = vpack.c.bf16 %v1188, %v1187
        %v1221 = vld [vmem:[%s4] sm:$0xf]
        %v1222 = vld [vmem:[%s4 + $0x4] sm:$0xf]
        %v1223 = vld [vmem:[%s4 + $0x8] sm:$0xf]
        %v1224 = vld [vmem:[%s4 + $0xc] sm:$0xf]
        %v1225 = vld [vmem:[%s4 + $0x10] sm:$0xf]
        %v1226 = vld [vmem:[%s4 + $0x14] sm:$0xf]
        %v1227 = vld [vmem:[%s4 + $0x18] sm:$0xf]
        %v1228 = vld [vmem:[%s4 + $0x1c] sm:$0xf]
        %v1229 = vld [vmem:[%s4 + $0x20] sm:$0xf]
        %v1230 = vld [vmem:[%s4 + $0x24] sm:$0xf]
        %v1231 = vld [vmem:[%s4 + $0x28] sm:$0xf]
        %v1232 = vld [vmem:[%s4 + $0x2c] sm:$0xf]
        %v1233 = vld [vmem:[%s4 + $0x30] sm:$0xf]
        %v1234 = vld [vmem:[%s4 + $0x34] sm:$0xf]
        %v1235 = vld [vmem:[%s4 + $0x38] sm:$0xf]
        %v1236 = vld [vmem:[%s4 + $0x3c] sm:$0xf]
        %v1237 = vld [vmem:[%s5] sm:$0x1]
        %v1239 = vlaneseq
        %v1240 = vshrl.u32 %v1239, 7
        %v1241 = vsub.s32 0, %v1240
        %v1242 = vrot.slane %v1237, %v1241
        %v1260 = vunpack.c.l.b16 %v1221
        %v1261 = vunpack.c.l.b16 %v1222
        %v1262 = vunpack.c.l.b16 %v1223
        %v1263 = vunpack.c.l.b16 %v1224
        %v1264 = vunpack.c.l.b16 %v1225
        %v1265 = vunpack.c.l.b16 %v1226
        %v1266 = vunpack.c.l.b16 %v1227
        %v1267 = vunpack.c.l.b16 %v1228
        %v1268 = vunpack.c.l.b16 %v1229
        %v1269 = vunpack.c.l.b16 %v1230
        %v1270 = vunpack.c.l.b16 %v1231
        %v1271 = vunpack.c.l.b16 %v1232
        %v1272 = vunpack.c.l.b16 %v1233
        %v1273 = vunpack.c.l.b16 %v1234
        %v1274 = vunpack.c.l.b16 %v1235
        %v1275 = vunpack.c.l.b16 %v1236
        %v1276 = vpack.c.b16 %v1261, %v1260
        %v1277 = vpack.c.b16 %v1263, %v1262
        %v1278 = vpack.c.b16 %v1265, %v1264
        %v1279 = vpack.c.b16 %v1267, %v1266
        %v1280 = vpack.c.b16 %v1269, %v1268
        %v1281 = vpack.c.b16 %v1271, %v1270
        %v1282 = vpack.c.b16 %v1273, %v1272
        %v1283 = vpack.c.b16 %v1275, %v1274
        %1292 = vmatprep.subr.bf16.mxu0 0
        %1293 = vmatpush1.bf16.msra.mxu0 %v1276
        %1294 = vmatprep.subr.bf16.mxu0 0
        %1295 = vmatpush1.bf16.msra.mxu0 %v1277
        %1296 = vmatprep.subr.bf16.mxu0 0
        %1297 = vmatpush1.bf16.msra.mxu0 %v1278
        %1298 = vmatprep.subr.bf16.mxu0 0
        %1299 = vmatpush1.bf16.msra.mxu0 %v1279
        %1300 = vmatprep.subr.bf16.mxu0 0
        %1301 = vmatpush1.bf16.msra.mxu0 %v1280
        %1302 = vmatprep.subr.bf16.mxu0 0
        %1303 = vmatpush1.bf16.msra.mxu0 %v1281
        %1304 = vmatprep.subr.bf16.mxu0 0
        %1305 = vmatpush1.bf16.msra.mxu0 %v1282
        %1306 = vmatprep.subr.bf16.mxu0 0
        %1307 = vmatpush1.bf16.msra.mxu0 %v1283
        %1308 = vmatprep.subr.bf16.mxu0 0
        %1309 = vmatpush1.bf16.msra.mxu0 0
        %1310 = vmatprep.subr.bf16.mxu0 0
        %1311 = vmatpush1.bf16.msra.mxu0 0
        %1312 = vmatprep.subr.bf16.mxu0 0
        %1313 = vmatpush1.bf16.msra.mxu0 0
        %1314 = vmatprep.subr.bf16.mxu0 0
        %1315 = vmatpush1.bf16.msra.mxu0 0
        %1316 = vmatprep.subr.bf16.mxu0 0
        %1317 = vmatpush1.bf16.msra.mxu0 0
        %1318 = vmatprep.subr.bf16.mxu0 0
        %1319 = vmatpush1.bf16.msra.mxu0 0
        %1320 = vmatprep.subr.bf16.mxu0 0
        %1321 = vmatpush1.bf16.msra.mxu0 0
        %1322 = vmatprep.subr.bf16.mxu0 0
        %1323 = vmatpush1.bf16.msra.mxu0 0
        %1324 = vmatprep.mubr.bf16.mxu0 0
        %1325 = vmatmul.mubr.bf16.gmra.mrb[0].mxu0 %v1189
        %v1326 = vpop.f32.mrb[0].mxu0
        %v1327 = vadd.f32 %v1242, %v1326
        %v1328 = vpop.f32.mrb[0].mxu0
        %v1329 = vpop.f32.mrb[0].mxu0
        %v1330 = vadd.f32 %v1242, %v1329
        %v1331 = vpop.f32.mrb[0].mxu0
        %1332 = vmatprep.mubr.bf16.mxu0 0
        %1333 = vmatmul.mubr.bf16.gmra.mrb[0].mxu0 %v1190
        %v1334 = vpop.f32.mrb[0].mxu0
        %v1335 = vadd.f32 %v1242, %v1334
        %v1336 = vpop.f32.mrb[0].mxu0
        %v1337 = vpop.f32.mrb[0].mxu0
        %v1338 = vadd.f32 %v1242, %v1337
        %v1339 = vpop.f32.mrb[0].mxu0
        %1340 = vmatprep.mubr.bf16.mxu0 0
        %1341 = vmatmul.mubr.bf16.gmra.mrb[0].mxu0 %v1191
        %v1342 = vpop.f32.mrb[0].mxu0
        %v1343 = vadd.f32 %v1242, %v1342
        %v1344 = vpop.f32.mrb[0].mxu0
        %v1345 = vpop.f32.mrb[0].mxu0
        %v1346 = vadd.f32 %v1242, %v1345
        %v1347 = vpop.f32.mrb[0].mxu0
        %1348 = vmatprep.mubr.bf16.mxu0 0
        %1349 = vmatmul.mubr.bf16.gmra.mrb[0].mxu0 %v1192
        %v1350 = vpop.f32.mrb[0].mxu0
        %v1351 = vadd.f32 %v1242, %v1350
        %v1352 = vpop.f32.mrb[0].mxu0
        %v1353 = vpop.f32.mrb[0].mxu0
        %v1354 = vadd.f32 %v1242, %v1353
        %v1355 = vpop.f32.mrb[0].mxu0
        %1356 = vmatprep.mubr.bf16.mxu0 0
        %1357 = vmatmul.mubr.bf16.gmra.mrb[0].mxu0 %v1193
        %v1358 = vpop.f32.mrb[0].mxu0
        %v1359 = vadd.f32 %v1242, %v1358
        %v1360 = vpop.f32.mrb[0].mxu0
        %v1361 = vpop.f32.mrb[0].mxu0
        %v1362 = vadd.f32 %v1242, %v1361
        %v1363 = vpop.f32.mrb[0].mxu0
        %1364 = vmatprep.mubr.bf16.mxu0 0
        %1365 = vmatmul.mubr.bf16.gmra.mrb[0].mxu0 %v1194
        %v1366 = vpop.f32.mrb[0].mxu0
        %v1367 = vadd.f32 %v1242, %v1366
        %v1368 = vpop.f32.mrb[0].mxu0
        %v1369 = vpop.f32.mrb[0].mxu0
        %v1370 = vadd.f32 %v1242, %v1369
        %v1371 = vpop.f32.mrb[0].mxu0
        %1372 = vmatprep.mubr.bf16.mxu0 0
        %1373 = vmatmul.mubr.bf16.gmra.mrb[0].mxu0 %v1195
        %v1374 = vpop.f32.mrb[0].mxu0
        %v1375 = vadd.f32 %v1242, %v1374
        %v1376 = vpop.f32.mrb[0].mxu0
        %v1377 = vpop.f32.mrb[0].mxu0
        %v1378 = vadd.f32 %v1242, %v1377
        %v1379 = vpop.f32.mrb[0].mxu0
        %1380 = vmatprep.mubr.bf16.mxu0 0
        %1381 = vmatmul.mubr.bf16.gmra.mrb[0].mxu0 %v1196
        %v1382 = vpop.f32.mrb[0].mxu0
        %v1383 = vadd.f32 %v1242, %v1382
        %v1384 = vpop.f32.mrb[0].mxu0
        %v1385 = vpop.f32.mrb[0].mxu0
        %v1386 = vadd.f32 %v1242, %v1385
        %v1387 = vpop.f32.mrb[0].mxu0
        %1388 = vmatprep.mubr.bf16.mxu0 0
        %1389 = vmatmul.mubr.bf16.gmra.mrb[0].mxu0 %v1197
        %v1390 = vpop.f32.mrb[0].mxu0
        %v1391 = vadd.f32 %v1242, %v1390
        %v1392 = vpop.f32.mrb[0].mxu0
        %v1393 = vpop.f32.mrb[0].mxu0
        %v1394 = vadd.f32 %v1242, %v1393
        %v1395 = vpop.f32.mrb[0].mxu0
        %1396 = vmatprep.mubr.bf16.mxu0 0
        %1397 = vmatmul.mubr.bf16.gmra.mrb[0].mxu0 %v1198
        %v1398 = vpop.f32.mrb[0].mxu0
        %v1399 = vadd.f32 %v1242, %v1398
        %v1400 = vpop.f32.mrb[0].mxu0
        %v1401 = vpop.f32.mrb[0].mxu0
        %v1402 = vadd.f32 %v1242, %v1401
        %v1403 = vpop.f32.mrb[0].mxu0
        %1404 = vmatprep.mubr.bf16.mxu0 0
        %1405 = vmatmul.mubr.bf16.gmra.mrb[0].mxu0 %v1199
        %v1406 = vpop.f32.mrb[0].mxu0
        %v1407 = vadd.f32 %v1242, %v1406
        %v1408 = vpop.f32.mrb[0].mxu0
        %v1409 = vpop.f32.mrb[0].mxu0
        %v1410 = vadd.f32 %v1242, %v1409
        %v1411 = vpop.f32.mrb[0].mxu0
        %1412 = vmatprep.mubr.bf16.mxu0 0
        %1413 = vmatmul.mubr.bf16.gmra.mrb[0].mxu0 %v1200
        %v1414 = vpop.f32.mrb[0].mxu0
        %v1415 = vadd.f32 %v1242, %v1414
        %v1416 = vpop.f32.mrb[0].mxu0
        %v1417 = vpop.f32.mrb[0].mxu0
        %v1418 = vadd.f32 %v1242, %v1417
        %v1419 = vpop.f32.mrb[0].mxu0
        %1420 = vmatprep.mubr.bf16.mxu0 0
        %1421 = vmatmul.mubr.bf16.gmra.mrb[0].mxu0 %v1201
        %v1422 = vpop.f32.mrb[0].mxu0
        %v1423 = vadd.f32 %v1242, %v1422
        %v1424 = vpop.f32.mrb[0].mxu0
        %v1425 = vpop.f32.mrb[0].mxu0
        %v1426 = vadd.f32 %v1242, %v1425
        %v1427 = vpop.f32.mrb[0].mxu0
        %1428 = vmatprep.mubr.bf16.mxu0 0
        %1429 = vmatmul.mubr.bf16.gmra.mrb[0].mxu0 %v1202
        %v1430 = vpop.f32.mrb[0].mxu0
        %v1431 = vadd.f32 %v1242, %v1430
        %v1432 = vpop.f32.mrb[0].mxu0
        %v1433 = vpop.f32.mrb[0].mxu0
        %v1434 = vadd.f32 %v1242, %v1433
        %v1435 = vpop.f32.mrb[0].mxu0
        %1436 = vmatprep.mubr.bf16.mxu0 0
        %1437 = vmatmul.mubr.bf16.gmra.mrb[0].mxu0 %v1203
        %v1438 = vpop.f32.mrb[0].mxu0
        %v1439 = vadd.f32 %v1242, %v1438
        %v1440 = vpop.f32.mrb[0].mxu0
        %v1441 = vpop.f32.mrb[0].mxu0
        %v1442 = vadd.f32 %v1242, %v1441
        %v1443 = vpop.f32.mrb[0].mxu0
        %1444 = vmatprep.mubr.bf16.mxu0 0
        %1445 = vmatmul.mubr.bf16.gmra.mrb[0].mxu0 %v1204
        %v1446 = vpop.f32.mrb[0].mxu0
        %v1447 = vadd.f32 %v1242, %v1446
        %v1448 = vpop.f32.mrb[0].mxu0
        %v1449 = vpop.f32.mrb[0].mxu0
        %v1450 = vadd.f32 %v1242, %v1449
        %v1451 = vpop.f32.mrb[0].mxu0
        %1452 = vmatprep.mubr.bf16.mxu0 0
        %1453 = vmatmul.mubr.bf16.gmra.mrb[0].mxu0 %v1205
        %v1454 = vpop.f32.mrb[0].mxu0
        %v1455 = vadd.f32 %v1242, %v1454
        %v1456 = vpop.f32.mrb[0].mxu0
        %v1457 = vpop.f32.mrb[0].mxu0
        %v1458 = vadd.f32 %v1242, %v1457
        %v1459 = vpop.f32.mrb[0].mxu0
        %1460 = vmatprep.mubr.bf16.mxu0 0
        %1461 = vmatmul.mubr.bf16.gmra.mrb[0].mxu0 %v1206
        %v1462 = vpop.f32.mrb[0].mxu0
        %v1463 = vadd.f32 %v1242, %v1462
        %v1464 = vpop.f32.mrb[0].mxu0
        %v1465 = vpop.f32.mrb[0].mxu0
        %v1466 = vadd.f32 %v1242, %v1465
        %v1467 = vpop.f32.mrb[0].mxu0
        %1468 = vmatprep.mubr.bf16.mxu0 0
        %1469 = vmatmul.mubr.bf16.gmra.mrb[0].mxu0 %v1207
        %v1470 = vpop.f32.mrb[0].mxu0
        %v1471 = vadd.f32 %v1242, %v1470
        %v1472 = vpop.f32.mrb[0].mxu0
        %v1473 = vpop.f32.mrb[0].mxu0
        %v1474 = vadd.f32 %v1242, %v1473
        %v1475 = vpop.f32.mrb[0].mxu0
        %1476 = vmatprep.mubr.bf16.mxu0 0
        %1477 = vmatmul.mubr.bf16.gmra.mrb[0].mxu0 %v1208
        %v1478 = vpop.f32.mrb[0].mxu0
        %v1479 = vadd.f32 %v1242, %v1478
        %v1480 = vpop.f32.mrb[0].mxu0
        %v1481 = vpop.f32.mrb[0].mxu0
        %v1482 = vadd.f32 %v1242, %v1481
        %v1483 = vpop.f32.mrb[0].mxu0
        %1484 = vmatprep.mubr.bf16.mxu0 0
        %1485 = vmatmul.mubr.bf16.gmra.mrb[0].mxu0 %v1209
        %v1486 = vpop.f32.mrb[0].mxu0
        %v1487 = vadd.f32 %v1242, %v1486
        %v1488 = vpop.f32.mrb[0].mxu0
        %v1489 = vpop.f32.mrb[0].mxu0
        %v1490 = vadd.f32 %v1242, %v1489
        %v1491 = vpop.f32.mrb[0].mxu0
        %1492 = vmatprep.mubr.bf16.mxu0 0
        %1493 = vmatmul.mubr.bf16.gmra.mrb[0].mxu0 %v1210
        %v1494 = vpop.f32.mrb[0].mxu0
        %v1495 = vadd.f32 %v1242, %v1494
        %v1496 = vpop.f32.mrb[0].mxu0
        %v1497 = vpop.f32.mrb[0].mxu0
        %v1498 = vadd.f32 %v1242, %v1497
        %v1499 = vpop.f32.mrb[0].mxu0
        %1500 = vmatprep.mubr.bf16.mxu0 0
        %1501 = vmatmul.mubr.bf16.gmra.mrb[0].mxu0 %v1211
        %v1502 = vpop.f32.mrb[0].mxu0
        %v1503 = vadd.f32 %v1242, %v1502
        %v1504 = vpop.f32.mrb[0].mxu0
        %v1505 = vpop.f32.mrb[0].mxu0
        %v1506 = vadd.f32 %v1242, %v1505
        %v1507 = vpop.f32.mrb[0].mxu0
        %1508 = vmatprep.mubr.bf16.mxu0 0
        %1509 = vmatmul.mubr.bf16.gmra.mrb[0].mxu0 %v1212
        %v1510 = vpop.f32.mrb[0].mxu0
        %v1511 = vadd.f32 %v1242, %v1510
        %v1512 = vpop.f32.mrb[0].mxu0
        %v1513 = vpop.f32.mrb[0].mxu0
        %v1514 = vadd.f32 %v1242, %v1513
        %v1515 = vpop.f32.mrb[0].mxu0
        %1516 = vmatprep.mubr.bf16.mxu0 0
        %1517 = vmatmul.mubr.bf16.gmra.mrb[0].mxu0 %v1213
        %v1518 = vpop.f32.mrb[0].mxu0
        %v1519 = vadd.f32 %v1242, %v1518
        %v1520 = vpop.f32.mrb[0].mxu0
        %v1521 = vpop.f32.mrb[0].mxu0
        %v1522 = vadd.f32 %v1242, %v1521
        %v1523 = vpop.f32.mrb[0].mxu0
        %1524 = vmatprep.mubr.bf16.mxu0 0
        %1525 = vmatmul.mubr.bf16.gmra.mrb[0].mxu0 %v1214
        %v1526 = vpop.f32.mrb[0].mxu0
        %v1527 = vadd.f32 %v1242, %v1526
        %v1528 = vpop.f32.mrb[0].mxu0
        %v1529 = vpop.f32.mrb[0].mxu0
        %v1530 = vadd.f32 %v1242, %v1529
        %v1531 = vpop.f32.mrb[0].mxu0
        %1532 = vmatprep.mubr.bf16.mxu0 0
        %1533 = vmatmul.mubr.bf16.gmra.mrb[0].mxu0 %v1215
        %v1534 = vpop.f32.mrb[0].mxu0
        %v1535 = vadd.f32 %v1242, %v1534
        %v1536 = vpop.f32.mrb[0].mxu0
        %v1537 = vpop.f32.mrb[0].mxu0
        %v1538 = vadd.f32 %v1242, %v1537
        %v1539 = vpop.f32.mrb[0].mxu0
        %1540 = vmatprep.mubr.bf16.mxu0 0
        %1541 = vmatmul.mubr.bf16.gmra.mrb[0].mxu0 %v1216
        %v1542 = vpop.f32.mrb[0].mxu0
        %v1543 = vadd.f32 %v1242, %v1542
        %v1544 = vpop.f32.mrb[0].mxu0
        %v1545 = vpop.f32.mrb[0].mxu0
        %v1546 = vadd.f32 %v1242, %v1545
        %v1547 = vpop.f32.mrb[0].mxu0
        %1548 = vmatprep.mubr.bf16.mxu0 0
        %1549 = vmatmul.mubr.bf16.gmra.mrb[0].mxu0 %v1217
        %v1550 = vpop.f32.mrb[0].mxu0
        %v1551 = vadd.f32 %v1242, %v1550
        %v1552 = vpop.f32.mrb[0].mxu0
        %v1553 = vpop.f32.mrb[0].mxu0
        %v1554 = vadd.f32 %v1242, %v1553
        %v1555 = vpop.f32.mrb[0].mxu0
        %1556 = vmatprep.mubr.bf16.mxu0 0
        %1557 = vmatmul.mubr.bf16.gmra.mrb[0].mxu0 %v1218
        %v1558 = vpop.f32.mrb[0].mxu0
        %v1559 = vadd.f32 %v1242, %v1558
        %v1560 = vpop.f32.mrb[0].mxu0
        %v1561 = vpop.f32.mrb[0].mxu0
        %v1562 = vadd.f32 %v1242, %v1561
        %v1563 = vpop.f32.mrb[0].mxu0
        %1564 = vmatprep.mubr.bf16.mxu0 0
        %1565 = vmatmul.mubr.bf16.gmra.mrb[0].mxu0 %v1219
        %v1566 = vpop.f32.mrb[0].mxu0
        %v1567 = vadd.f32 %v1242, %v1566
        %v1568 = vpop.f32.mrb[0].mxu0
        %v1569 = vpop.f32.mrb[0].mxu0
        %v1570 = vadd.f32 %v1242, %v1569
        %v1571 = vpop.f32.mrb[0].mxu0
        %1572 = vmatprep.mubr.bf16.mxu0 0
        %1573 = vmatmul.mubr.bf16.gmra.mrb[0].mxu0 %v1220
        %v1574 = vpop.f32.mrb[0].mxu0
        %v1575 = vadd.f32 %v1242, %v1574
        %v1576 = vpop.f32.mrb[0].mxu0
        %v1577 = vpop.f32.mrb[0].mxu0
        %v1578 = vadd.f32 %v1242, %v1577
        %v1579 = vpop.f32.mrb[0].mxu0
        %1580 = vdwg.mxu0
        %v1581 = vmax.f32 %v1327, 0.0
        %v1582 = vmax.f32 %v1330, 0.0
        %v1583 = vmax.f32 %v1335, 0.0
        %v1584 = vmax.f32 %v1338, 0.0
        %v1585 = vmax.f32 %v1343, 0.0
        %v1586 = vmax.f32 %v1346, 0.0
        %v1587 = vmax.f32 %v1351, 0.0
        %v1588 = vmax.f32 %v1354, 0.0
        %v1589 = vmax.f32 %v1359, 0.0
        %v1590 = vmax.f32 %v1362, 0.0
        %v1591 = vmax.f32 %v1367, 0.0
        %v1592 = vmax.f32 %v1370, 0.0
        %v1593 = vmax.f32 %v1375, 0.0
        %v1594 = vmax.f32 %v1378, 0.0
        %v1595 = vmax.f32 %v1383, 0.0
        %v1596 = vmax.f32 %v1386, 0.0
        %v1597 = vmax.f32 %v1391, 0.0
        %v1598 = vmax.f32 %v1394, 0.0
        %v1599 = vmax.f32 %v1399, 0.0
        %v1600 = vmax.f32 %v1402, 0.0
        %v1601 = vmax.f32 %v1407, 0.0
        %v1602 = vmax.f32 %v1410, 0.0
        %v1603 = vmax.f32 %v1415, 0.0
        %v1604 = vmax.f32 %v1418, 0.0
        %v1605 = vmax.f32 %v1423, 0.0
        %v1606 = vmax.f32 %v1426, 0.0
        %v1607 = vmax.f32 %v1431, 0.0
        %v1608 = vmax.f32 %v1434, 0.0
        %v1609 = vmax.f32 %v1439, 0.0
        %v1610 = vmax.f32 %v1442, 0.0
        %v1611 = vmax.f32 %v1447, 0.0
        %v1612 = vmax.f32 %v1450, 0.0
        %v1613 = vmax.f32 %v1455, 0.0
        %v1614 = vmax.f32 %v1458, 0.0
        %v1615 = vmax.f32 %v1463, 0.0
        %v1616 = vmax.f32 %v1466, 0.0
        %v1617 = vmax.f32 %v1471, 0.0
        %v1618 = vmax.f32 %v1474, 0.0
        %v1619 = vmax.f32 %v1479, 0.0
        %v1620 = vmax.f32 %v1482, 0.0
        %v1621 = vmax.f32 %v1487, 0.0
        %v1622 = vmax.f32 %v1490, 0.0
        %v1623 = vmax.f32 %v1495, 0.0
        %v1624 = vmax.f32 %v1498, 0.0
        %v1625 = vmax.f32 %v1503, 0.0
        %v1626 = vmax.f32 %v1506, 0.0
        %v1627 = vmax.f32 %v1511, 0.0
        %v1628 = vmax.f32 %v1514, 0.0
        %v1629 = vmax.f32 %v1519, 0.0
        %v1630 = vmax.f32 %v1522, 0.0
        %v1631 = vmax.f32 %v1527, 0.0
        %v1632 = vmax.f32 %v1530, 0.0
        %v1633 = vmax.f32 %v1535, 0.0
        %v1634 = vmax.f32 %v1538, 0.0
        %v1635 = vmax.f32 %v1543, 0.0
        %v1636 = vmax.f32 %v1546, 0.0
        %v1637 = vmax.f32 %v1551, 0.0
        %v1638 = vmax.f32 %v1554, 0.0
        %v1639 = vmax.f32 %v1559, 0.0
        %v1640 = vmax.f32 %v1562, 0.0
        %v1641 = vmax.f32 %v1567, 0.0
        %v1642 = vmax.f32 %v1570, 0.0
        %v1643 = vmax.f32 %v1575, 0.0
        %v1644 = vmax.f32 %v1578, 0.0
        %v1645 = vpack.c.bf16 %v1582, %v1581
        %v1646 = vpack.c.bf16 %v1584, %v1583
        %v1647 = vpack.c.bf16 %v1586, %v1585
        %v1648 = vpack.c.bf16 %v1588, %v1587
        %v1649 = vpack.c.bf16 %v1590, %v1589
        %v1650 = vpack.c.bf16 %v1592, %v1591
        %v1651 = vpack.c.bf16 %v1594, %v1593
        %v1652 = vpack.c.bf16 %v1596, %v1595
        %v1653 = vpack.c.bf16 %v1598, %v1597
        %v1654 = vpack.c.bf16 %v1600, %v1599
        %v1655 = vpack.c.bf16 %v1602, %v1601
        %v1656 = vpack.c.bf16 %v1604, %v1603
        %v1657 = vpack.c.bf16 %v1606, %v1605
        %v1658 = vpack.c.bf16 %v1608, %v1607
        %v1659 = vpack.c.bf16 %v1610, %v1609
        %v1660 = vpack.c.bf16 %v1612, %v1611
        %v1661 = vpack.c.bf16 %v1614, %v1613
        %v1662 = vpack.c.bf16 %v1616, %v1615
        %v1663 = vpack.c.bf16 %v1618, %v1617
        %v1664 = vpack.c.bf16 %v1620, %v1619
        %v1665 = vpack.c.bf16 %v1622, %v1621
        %v1666 = vpack.c.bf16 %v1624, %v1623
        %v1667 = vpack.c.bf16 %v1626, %v1625
        %v1668 = vpack.c.bf16 %v1628, %v1627
        %v1669 = vpack.c.bf16 %v1630, %v1629
        %v1670 = vpack.c.bf16 %v1632, %v1631
        %v1671 = vpack.c.bf16 %v1634, %v1633
        %v1672 = vpack.c.bf16 %v1636, %v1635
        %v1673 = vpack.c.bf16 %v1638, %v1637
        %v1674 = vpack.c.bf16 %v1640, %v1639
        %v1675 = vpack.c.bf16 %v1642, %v1641
        %v1676 = vpack.c.bf16 %v1644, %v1643
        %v1677 = vld [vmem:[%s6] sm:$0xf]
        %v1678 = vld [vmem:[%s6 + $0x4] sm:$0xf]
        %v1679 = vld [vmem:[%s6 + $0x8] sm:$0xf]
        %v1680 = vld [vmem:[%s6 + $0xc] sm:$0xf]
        %v1681 = vld [vmem:[%s6 + $0x10] sm:$0xf]
        %v1682 = vld [vmem:[%s6 + $0x14] sm:$0xf]
        %v1683 = vld [vmem:[%s6 + $0x18] sm:$0xf]
        %v1684 = vld [vmem:[%s6 + $0x1c] sm:$0xf]
        %v1685 = vld [vmem:[%s6 + $0x20] sm:$0xf]
        %v1686 = vld [vmem:[%s6 + $0x24] sm:$0xf]
        %v1687 = vld [vmem:[%s6 + $0x28] sm:$0xf]
        %v1688 = vld [vmem:[%s6 + $0x2c] sm:$0xf]
        %v1689 = vld [vmem:[%s6 + $0x30] sm:$0xf]
        %v1690 = vld [vmem:[%s6 + $0x34] sm:$0xf]
        %v1691 = vld [vmem:[%s6 + $0x38] sm:$0xf]
        %v1692 = vld [vmem:[%s6 + $0x3c] sm:$0xf]
        %v1693 = vld [vmem:[%s7] sm:$0x1]
        %v1695 = vlaneseq
        %v1696 = vshrl.u32 %v1695, 7
        %v1697 = vsub.s32 0, %v1696
        %v1698 = vrot.slane %v1693, %v1697
        %v1716 = vunpack.c.l.b16 %v1677
        %v1717 = vunpack.c.l.b16 %v1678
        %v1718 = vunpack.c.l.b16 %v1679
        %v1719 = vunpack.c.l.b16 %v1680
        %v1720 = vunpack.c.l.b16 %v1681
        %v1721 = vunpack.c.l.b16 %v1682
        %v1722 = vunpack.c.l.b16 %v1683
        %v1723 = vunpack.c.l.b16 %v1684
        %v1724 = vunpack.c.l.b16 %v1685
        %v1725 = vunpack.c.l.b16 %v1686
        %v1726 = vunpack.c.l.b16 %v1687
        %v1727 = vunpack.c.l.b16 %v1688
        %v1728 = vunpack.c.l.b16 %v1689
        %v1729 = vunpack.c.l.b16 %v1690
        %v1730 = vunpack.c.l.b16 %v1691
        %v1731 = vunpack.c.l.b16 %v1692
        %v1732 = vpack.c.b16 %v1717, %v1716
        %v1733 = vpack.c.b16 %v1719, %v1718
        %v1734 = vpack.c.b16 %v1721, %v1720
        %v1735 = vpack.c.b16 %v1723, %v1722
        %v1736 = vpack.c.b16 %v1725, %v1724
        %v1737 = vpack.c.b16 %v1727, %v1726
        %v1738 = vpack.c.b16 %v1729, %v1728
        %v1739 = vpack.c.b16 %v1731, %v1730
        %1748 = vmatprep.subr.bf16.mxu0 0
        %1749 = vmatpush1.bf16.msra.mxu0 %v1732
        %1750 = vmatprep.subr.bf16.mxu0 0
        %1751 = vmatpush1.bf16.msra.mxu0 %v1733
        %1752 = vmatprep.subr.bf16.mxu0 0
        %1753 = vmatpush1.bf16.msra.mxu0 %v1734
        %1754 = vmatprep.subr.bf16.mxu0 0
        %1755 = vmatpush1.bf16.msra.mxu0 %v1735
        %1756 = vmatprep.subr.bf16.mxu0 0
        %1757 = vmatpush1.bf16.msra.mxu0 %v1736
        %1758 = vmatprep.subr.bf16.mxu0 0
        %1759 = vmatpush1.bf16.msra.mxu0 %v1737
        %1760 = vmatprep.subr.bf16.mxu0 0
        %1761 = vmatpush1.bf16.msra.mxu0 %v1738
        %1762 = vmatprep.subr.bf16.mxu0 0
        %1763 = vmatpush1.bf16.msra.mxu0 %v1739
        %1764 = vmatprep.subr.bf16.mxu0 0
        %1765 = vmatpush1.bf16.msra.mxu0 0
        %1766 = vmatprep.subr.bf16.mxu0 0
        %1767 = vmatpush1.bf16.msra.mxu0 0
        %1768 = vmatprep.subr.bf16.mxu0 0
        %1769 = vmatpush1.bf16.msra.mxu0 0
        %1770 = vmatprep.subr.bf16.mxu0 0
        %1771 = vmatpush1.bf16.msra.mxu0 0
        %1772 = vmatprep.subr.bf16.mxu0 0
        %1773 = vmatpush1.bf16.msra.mxu0 0
        %1774 = vmatprep.subr.bf16.mxu0 0
        %1775 = vmatpush1.bf16.msra.mxu0 0
        %1776 = vmatprep.subr.bf16.mxu0 0
        %1777 = vmatpush1.bf16.msra.mxu0 0
        %1778 = vmatprep.subr.bf16.mxu0 0
        %1779 = vmatpush1.bf16.msra.mxu0 0
        %1780 = vmatprep.mubr.bf16.mxu0 0
        %1781 = vmatmul.mubr.bf16.gmra.mrb[0].mxu0 %v1645
        %v1782 = vpop.f32.mrb[0].mxu0
        %v1783 = vadd.f32 %v1698, %v1782
        %v1784 = vpop.f32.mrb[0].mxu0
        %v1785 = vpop.f32.mrb[0].mxu0
        %v1786 = vadd.f32 %v1698, %v1785
        %v1787 = vpop.f32.mrb[0].mxu0
        %1788 = vmatprep.mubr.bf16.mxu0 0
        %1789 = vmatmul.mubr.bf16.gmra.mrb[0].mxu0 %v1646
        %v1790 = vpop.f32.mrb[0].mxu0
        %v1791 = vadd.f32 %v1698, %v1790
        %v1792 = vpop.f32.mrb[0].mxu0
        %v1793 = vpop.f32.mrb[0].mxu0
        %v1794 = vadd.f32 %v1698, %v1793
        %v1795 = vpop.f32.mrb[0].mxu0
        %1796 = vmatprep.mubr.bf16.mxu0 0
        %1797 = vmatmul.mubr.bf16.gmra.mrb[0].mxu0 %v1647
        %v1798 = vpop.f32.mrb[0].mxu0
        %v1799 = vadd.f32 %v1698, %v1798
        %v1800 = vpop.f32.mrb[0].mxu0
        %v1801 = vpop.f32.mrb[0].mxu0
        %v1802 = vadd.f32 %v1698, %v1801
        %v1803 = vpop.f32.mrb[0].mxu0
        %1804 = vmatprep.mubr.bf16.mxu0 0
        %1805 = vmatmul.mubr.bf16.gmra.mrb[0].mxu0 %v1648
        %v1806 = vpop.f32.mrb[0].mxu0
        %v1807 = vadd.f32 %v1698, %v1806
        %v1808 = vpop.f32.mrb[0].mxu0
        %v1809 = vpop.f32.mrb[0].mxu0
        %v1810 = vadd.f32 %v1698, %v1809
        %v1811 = vpop.f32.mrb[0].mxu0
        %1812 = vmatprep.mubr.bf16.mxu0 0
        %1813 = vmatmul.mubr.bf16.gmra.mrb[0].mxu0 %v1649
        %v1814 = vpop.f32.mrb[0].mxu0
        %v1815 = vadd.f32 %v1698, %v1814
        %v1816 = vpop.f32.mrb[0].mxu0
        %v1817 = vpop.f32.mrb[0].mxu0
        %v1818 = vadd.f32 %v1698, %v1817
        %v1819 = vpop.f32.mrb[0].mxu0
        %1820 = vmatprep.mubr.bf16.mxu0 0
        %1821 = vmatmul.mubr.bf16.gmra.mrb[0].mxu0 %v1650
        %v1822 = vpop.f32.mrb[0].mxu0
        %v1823 = vadd.f32 %v1698, %v1822
        %v1824 = vpop.f32.mrb[0].mxu0
        %v1825 = vpop.f32.mrb[0].mxu0
        %v1826 = vadd.f32 %v1698, %v1825
        %v1827 = vpop.f32.mrb[0].mxu0
        %1828 = vmatprep.mubr.bf16.mxu0 0
        %1829 = vmatmul.mubr.bf16.gmra.mrb[0].mxu0 %v1651
        %v1830 = vpop.f32.mrb[0].mxu0
        %v1831 = vadd.f32 %v1698, %v1830
        %v1832 = vpop.f32.mrb[0].mxu0
        %v1833 = vpop.f32.mrb[0].mxu0
        %v1834 = vadd.f32 %v1698, %v1833
        %v1835 = vpop.f32.mrb[0].mxu0
        %1836 = vmatprep.mubr.bf16.mxu0 0
        %1837 = vmatmul.mubr.bf16.gmra.mrb[0].mxu0 %v1652
        %v1838 = vpop.f32.mrb[0].mxu0
        %v1839 = vadd.f32 %v1698, %v1838
        %v1840 = vpop.f32.mrb[0].mxu0
        %v1841 = vpop.f32.mrb[0].mxu0
        %v1842 = vadd.f32 %v1698, %v1841
        %v1843 = vpop.f32.mrb[0].mxu0
        %1844 = vmatprep.mubr.bf16.mxu0 0
        %1845 = vmatmul.mubr.bf16.gmra.mrb[0].mxu0 %v1653
        %v1846 = vpop.f32.mrb[0].mxu0
        %v1847 = vadd.f32 %v1698, %v1846
        %v1848 = vpop.f32.mrb[0].mxu0
        %v1849 = vpop.f32.mrb[0].mxu0
        %v1850 = vadd.f32 %v1698, %v1849
        %v1851 = vpop.f32.mrb[0].mxu0
        %1852 = vmatprep.mubr.bf16.mxu0 0
        %1853 = vmatmul.mubr.bf16.gmra.mrb[0].mxu0 %v1654
        %v1854 = vpop.f32.mrb[0].mxu0
        %v1855 = vadd.f32 %v1698, %v1854
        %v1856 = vpop.f32.mrb[0].mxu0
        %v1857 = vpop.f32.mrb[0].mxu0
        %v1858 = vadd.f32 %v1698, %v1857
        %v1859 = vpop.f32.mrb[0].mxu0
        %1860 = vmatprep.mubr.bf16.mxu0 0
        %1861 = vmatmul.mubr.bf16.gmra.mrb[0].mxu0 %v1655
        %v1862 = vpop.f32.mrb[0].mxu0
        %v1863 = vadd.f32 %v1698, %v1862
        %v1864 = vpop.f32.mrb[0].mxu0
        %v1865 = vpop.f32.mrb[0].mxu0
        %v1866 = vadd.f32 %v1698, %v1865
        %v1867 = vpop.f32.mrb[0].mxu0
        %1868 = vmatprep.mubr.bf16.mxu0 0
        %1869 = vmatmul.mubr.bf16.gmra.mrb[0].mxu0 %v1656
        %v1870 = vpop.f32.mrb[0].mxu0
        %v1871 = vadd.f32 %v1698, %v1870
        %v1872 = vpop.f32.mrb[0].mxu0
        %v1873 = vpop.f32.mrb[0].mxu0
        %v1874 = vadd.f32 %v1698, %v1873
        %v1875 = vpop.f32.mrb[0].mxu0
        %1876 = vmatprep.mubr.bf16.mxu0 0
        %1877 = vmatmul.mubr.bf16.gmra.mrb[0].mxu0 %v1657
        %v1878 = vpop.f32.mrb[0].mxu0
        %v1879 = vadd.f32 %v1698, %v1878
        %v1880 = vpop.f32.mrb[0].mxu0
        %v1881 = vpop.f32.mrb[0].mxu0
        %v1882 = vadd.f32 %v1698, %v1881
        %v1883 = vpop.f32.mrb[0].mxu0
        %1884 = vmatprep.mubr.bf16.mxu0 0
        %1885 = vmatmul.mubr.bf16.gmra.mrb[0].mxu0 %v1658
        %v1886 = vpop.f32.mrb[0].mxu0
        %v1887 = vadd.f32 %v1698, %v1886
        %v1888 = vpop.f32.mrb[0].mxu0
        %v1889 = vpop.f32.mrb[0].mxu0
        %v1890 = vadd.f32 %v1698, %v1889
        %v1891 = vpop.f32.mrb[0].mxu0
        %1892 = vmatprep.mubr.bf16.mxu0 0
        %1893 = vmatmul.mubr.bf16.gmra.mrb[0].mxu0 %v1659
        %v1894 = vpop.f32.mrb[0].mxu0
        %v1895 = vadd.f32 %v1698, %v1894
        %v1896 = vpop.f32.mrb[0].mxu0
        %v1897 = vpop.f32.mrb[0].mxu0
        %v1898 = vadd.f32 %v1698, %v1897
        %v1899 = vpop.f32.mrb[0].mxu0
        %1900 = vmatprep.mubr.bf16.mxu0 0
        %1901 = vmatmul.mubr.bf16.gmra.mrb[0].mxu0 %v1660
        %v1902 = vpop.f32.mrb[0].mxu0
        %v1903 = vadd.f32 %v1698, %v1902
        %v1904 = vpop.f32.mrb[0].mxu0
        %v1905 = vpop.f32.mrb[0].mxu0
        %v1906 = vadd.f32 %v1698, %v1905
        %v1907 = vpop.f32.mrb[0].mxu0
        %1908 = vmatprep.mubr.bf16.mxu0 0
        %1909 = vmatmul.mubr.bf16.gmra.mrb[0].mxu0 %v1661
        %v1910 = vpop.f32.mrb[0].mxu0
        %v1911 = vadd.f32 %v1698, %v1910
        %v1912 = vpop.f32.mrb[0].mxu0
        %v1913 = vpop.f32.mrb[0].mxu0
        %v1914 = vadd.f32 %v1698, %v1913
        %v1915 = vpop.f32.mrb[0].mxu0
        %1916 = vmatprep.mubr.bf16.mxu0 0
        %1917 = vmatmul.mubr.bf16.gmra.mrb[0].mxu0 %v1662
        %v1918 = vpop.f32.mrb[0].mxu0
        %v1919 = vadd.f32 %v1698, %v1918
        %v1920 = vpop.f32.mrb[0].mxu0
        %v1921 = vpop.f32.mrb[0].mxu0
        %v1922 = vadd.f32 %v1698, %v1921
        %v1923 = vpop.f32.mrb[0].mxu0
        %1924 = vmatprep.mubr.bf16.mxu0 0
        %1925 = vmatmul.mubr.bf16.gmra.mrb[0].mxu0 %v1663
        %v1926 = vpop.f32.mrb[0].mxu0
        %v1927 = vadd.f32 %v1698, %v1926
        %v1928 = vpop.f32.mrb[0].mxu0
        %v1929 = vpop.f32.mrb[0].mxu0
        %v1930 = vadd.f32 %v1698, %v1929
        %v1931 = vpop.f32.mrb[0].mxu0
        %1932 = vmatprep.mubr.bf16.mxu0 0
        %1933 = vmatmul.mubr.bf16.gmra.mrb[0].mxu0 %v1664
        %v1934 = vpop.f32.mrb[0].mxu0
        %v1935 = vadd.f32 %v1698, %v1934
        %v1936 = vpop.f32.mrb[0].mxu0
        %v1937 = vpop.f32.mrb[0].mxu0
        %v1938 = vadd.f32 %v1698, %v1937
        %v1939 = vpop.f32.mrb[0].mxu0
        %1940 = vmatprep.mubr.bf16.mxu0 0
        %1941 = vmatmul.mubr.bf16.gmra.mrb[0].mxu0 %v1665
        %v1942 = vpop.f32.mrb[0].mxu0
        %v1943 = vadd.f32 %v1698, %v1942
        %v1944 = vpop.f32.mrb[0].mxu0
        %v1945 = vpop.f32.mrb[0].mxu0
        %v1946 = vadd.f32 %v1698, %v1945
        %v1947 = vpop.f32.mrb[0].mxu0
        %1948 = vmatprep.mubr.bf16.mxu0 0
        %1949 = vmatmul.mubr.bf16.gmra.mrb[0].mxu0 %v1666
        %v1950 = vpop.f32.mrb[0].mxu0
        %v1951 = vadd.f32 %v1698, %v1950
        %v1952 = vpop.f32.mrb[0].mxu0
        %v1953 = vpop.f32.mrb[0].mxu0
        %v1954 = vadd.f32 %v1698, %v1953
        %v1955 = vpop.f32.mrb[0].mxu0
        %1956 = vmatprep.mubr.bf16.mxu0 0
        %1957 = vmatmul.mubr.bf16.gmra.mrb[0].mxu0 %v1667
        %v1958 = vpop.f32.mrb[0].mxu0
        %v1959 = vadd.f32 %v1698, %v1958
        %v1960 = vpop.f32.mrb[0].mxu0
        %v1961 = vpop.f32.mrb[0].mxu0
        %v1962 = vadd.f32 %v1698, %v1961
        %v1963 = vpop.f32.mrb[0].mxu0
        %1964 = vmatprep.mubr.bf16.mxu0 0
        %1965 = vmatmul.mubr.bf16.gmra.mrb[0].mxu0 %v1668
        %v1966 = vpop.f32.mrb[0].mxu0
        %v1967 = vadd.f32 %v1698, %v1966
        %v1968 = vpop.f32.mrb[0].mxu0
        %v1969 = vpop.f32.mrb[0].mxu0
        %v1970 = vadd.f32 %v1698, %v1969
        %v1971 = vpop.f32.mrb[0].mxu0
        %1972 = vmatprep.mubr.bf16.mxu0 0
        %1973 = vmatmul.mubr.bf16.gmra.mrb[0].mxu0 %v1669
        %v1974 = vpop.f32.mrb[0].mxu0
        %v1975 = vadd.f32 %v1698, %v1974
        %v1976 = vpop.f32.mrb[0].mxu0
        %v1977 = vpop.f32.mrb[0].mxu0
        %v1978 = vadd.f32 %v1698, %v1977
        %v1979 = vpop.f32.mrb[0].mxu0
        %1980 = vmatprep.mubr.bf16.mxu0 0
        %1981 = vmatmul.mubr.bf16.gmra.mrb[0].mxu0 %v1670
        %v1982 = vpop.f32.mrb[0].mxu0
        %v1983 = vadd.f32 %v1698, %v1982
        %v1984 = vpop.f32.mrb[0].mxu0
        %v1985 = vpop.f32.mrb[0].mxu0
        %v1986 = vadd.f32 %v1698, %v1985
        %v1987 = vpop.f32.mrb[0].mxu0
        %1988 = vmatprep.mubr.bf16.mxu0 0
        %1989 = vmatmul.mubr.bf16.gmra.mrb[0].mxu0 %v1671
        %v1990 = vpop.f32.mrb[0].mxu0
        %v1991 = vadd.f32 %v1698, %v1990
        %v1992 = vpop.f32.mrb[0].mxu0
        %v1993 = vpop.f32.mrb[0].mxu0
        %v1994 = vadd.f32 %v1698, %v1993
        %v1995 = vpop.f32.mrb[0].mxu0
        %1996 = vmatprep.mubr.bf16.mxu0 0
        %1997 = vmatmul.mubr.bf16.gmra.mrb[0].mxu0 %v1672
        %v1998 = vpop.f32.mrb[0].mxu0
        %v1999 = vadd.f32 %v1698, %v1998
        %v2000 = vpop.f32.mrb[0].mxu0
        %v2001 = vpop.f32.mrb[0].mxu0
        %v2002 = vadd.f32 %v1698, %v2001
        %v2003 = vpop.f32.mrb[0].mxu0
        %2004 = vmatprep.mubr.bf16.mxu0 0
        %2005 = vmatmul.mubr.bf16.gmra.mrb[0].mxu0 %v1673
        %v2006 = vpop.f32.mrb[0].mxu0
        %v2007 = vadd.f32 %v1698, %v2006
        %v2008 = vpop.f32.mrb[0].mxu0
        %v2009 = vpop.f32.mrb[0].mxu0
        %v2010 = vadd.f32 %v1698, %v2009
        %v2011 = vpop.f32.mrb[0].mxu0
        %2012 = vmatprep.mubr.bf16.mxu0 0
        %2013 = vmatmul.mubr.bf16.gmra.mrb[0].mxu0 %v1674
        %v2014 = vpop.f32.mrb[0].mxu0
        %v2015 = vadd.f32 %v1698, %v2014
        %v2016 = vpop.f32.mrb[0].mxu0
        %v2017 = vpop.f32.mrb[0].mxu0
        %v2018 = vadd.f32 %v1698, %v2017
        %v2019 = vpop.f32.mrb[0].mxu0
        %2020 = vmatprep.mubr.bf16.mxu0 0
        %2021 = vmatmul.mubr.bf16.gmra.mrb[0].mxu0 %v1675
        %v2022 = vpop.f32.mrb[0].mxu0
        %v2023 = vadd.f32 %v1698, %v2022
        %v2024 = vpop.f32.mrb[0].mxu0
        %v2025 = vpop.f32.mrb[0].mxu0
        %v2026 = vadd.f32 %v1698, %v2025
        %v2027 = vpop.f32.mrb[0].mxu0
        %2028 = vmatprep.mubr.bf16.mxu0 0
        %2029 = vmatmul.mubr.bf16.gmra.mrb[0].mxu0 %v1676
        %v2030 = vpop.f32.mrb[0].mxu0
        %v2031 = vadd.f32 %v1698, %v2030
        %v2032 = vpop.f32.mrb[0].mxu0
        %v2033 = vpop.f32.mrb[0].mxu0
        %v2034 = vadd.f32 %v1698, %v2033
        %v2035 = vpop.f32.mrb[0].mxu0
        %2036 = vdwg.mxu0
        %v2037 = vlaneseq
        %v2038 = vand.u32 %v2037, 127
        %vm2039 = vcmp.lt.s32.totalorder %v2038, 10
        %v2040 = vsel %vm2039, %v1783, -1e+30
        %v2041 = vsel %vm2039, %v1786, -1e+30
        %v2042 = vsel %vm2039, %v1791, -1e+30
        %v2043 = vsel %vm2039, %v1794, -1e+30
        %v2044 = vsel %vm2039, %v1799, -1e+30
        %v2045 = vsel %vm2039, %v1802, -1e+30
        %v2046 = vsel %vm2039, %v1807, -1e+30
        %v2047 = vsel %vm2039, %v1810, -1e+30
        %v2048 = vsel %vm2039, %v1815, -1e+30
        %v2049 = vsel %vm2039, %v1818, -1e+30
        %v2050 = vsel %vm2039, %v1823, -1e+30
        %v2051 = vsel %vm2039, %v1826, -1e+30
        %v2052 = vsel %vm2039, %v1831, -1e+30
        %v2053 = vsel %vm2039, %v1834, -1e+30
        %v2054 = vsel %vm2039, %v1839, -1e+30
        %v2055 = vsel %vm2039, %v1842, -1e+30
        %v2056 = vsel %vm2039, %v1847, -1e+30
        %v2057 = vsel %vm2039, %v1850, -1e+30
        %v2058 = vsel %vm2039, %v1855, -1e+30
        %v2059 = vsel %vm2039, %v1858, -1e+30
        %v2060 = vsel %vm2039, %v1863, -1e+30
        %v2061 = vsel %vm2039, %v1866, -1e+30
        %v2062 = vsel %vm2039, %v1871, -1e+30
        %v2063 = vsel %vm2039, %v1874, -1e+30
        %v2064 = vsel %vm2039, %v1879, -1e+30
        %v2065 = vsel %vm2039, %v1882, -1e+30
        %v2066 = vsel %vm2039, %v1887, -1e+30
        %v2067 = vsel %vm2039, %v1890, -1e+30
        %v2068 = vsel %vm2039, %v1895, -1e+30
        %v2069 = vsel %vm2039, %v1898, -1e+30
        %v2070 = vsel %vm2039, %v1903, -1e+30
        %v2071 = vsel %vm2039, %v1906, -1e+30
        %v2072 = vsel %vm2039, %v1911, -1e+30
        %v2073 = vsel %vm2039, %v1914, -1e+30
        %v2074 = vsel %vm2039, %v1919, -1e+30
        %v2075 = vsel %vm2039, %v1922, -1e+30
        %v2076 = vsel %vm2039, %v1927, -1e+30
        %v2077 = vsel %vm2039, %v1930, -1e+30
        %v2078 = vsel %vm2039, %v1935, -1e+30
        %v2079 = vsel %vm2039, %v1938, -1e+30
        %v2080 = vsel %vm2039, %v1943, -1e+30
        %v2081 = vsel %vm2039, %v1946, -1e+30
        %v2082 = vsel %vm2039, %v1951, -1e+30
        %v2083 = vsel %vm2039, %v1954, -1e+30
        %v2084 = vsel %vm2039, %v1959, -1e+30
        %v2085 = vsel %vm2039, %v1962, -1e+30
        %v2086 = vsel %vm2039, %v1967, -1e+30
        %v2087 = vsel %vm2039, %v1970, -1e+30
        %v2088 = vsel %vm2039, %v1975, -1e+30
        %v2089 = vsel %vm2039, %v1978, -1e+30
        %v2090 = vsel %vm2039, %v1983, -1e+30
        %v2091 = vsel %vm2039, %v1986, -1e+30
        %v2092 = vsel %vm2039, %v1991, -1e+30
        %v2093 = vsel %vm2039, %v1994, -1e+30
        %v2094 = vsel %vm2039, %v1999, -1e+30
        %v2095 = vsel %vm2039, %v2002, -1e+30
        %v2096 = vsel %vm2039, %v2007, -1e+30
        %v2097 = vsel %vm2039, %v2010, -1e+30
        %v2098 = vsel %vm2039, %v2015, -1e+30
        %v2099 = vsel %vm2039, %v2018, -1e+30
        %v2100 = vsel %vm2039, %v2023, -1e+30
        %v2101 = vsel %vm2039, %v2026, -1e+30
        %v2102 = vsel %vm2039, %v2031, -1e+30
        %v2103 = vsel %vm2039, %v2034, -1e+30
        %2104 = vmax.xlane.f32.xlu0 %v2040
        %v2105 = vpop.xlane.xlu0 %2104
        %2106 = vmax.xlane.f32.xlu0 %v2041
        %v2107 = vpop.xlane.xlu0 %2106
        %2108 = vmax.xlane.f32.xlu0 %v2042
        %v2109 = vpop.xlane.xlu0 %2108
        %2110 = vmax.xlane.f32.xlu0 %v2043
        %v2111 = vpop.xlane.xlu0 %2110
        %2112 = vmax.xlane.f32.xlu0 %v2044
        %v2113 = vpop.xlane.xlu0 %2112
        %2114 = vmax.xlane.f32.xlu0 %v2045
        %v2115 = vpop.xlane.xlu0 %2114
        %2116 = vmax.xlane.f32.xlu0 %v2046
        %v2117 = vpop.xlane.xlu0 %2116
        %2118 = vmax.xlane.f32.xlu0 %v2047
        %v2119 = vpop.xlane.xlu0 %2118
        %2120 = vmax.xlane.f32.xlu0 %v2048
        %v2121 = vpop.xlane.xlu0 %2120
        %2122 = vmax.xlane.f32.xlu0 %v2049
        %v2123 = vpop.xlane.xlu0 %2122
        %2124 = vmax.xlane.f32.xlu0 %v2050
        %v2125 = vpop.xlane.xlu0 %2124
        %2126 = vmax.xlane.f32.xlu0 %v2051
        %v2127 = vpop.xlane.xlu0 %2126
        %2128 = vmax.xlane.f32.xlu0 %v2052
        %v2129 = vpop.xlane.xlu0 %2128
        %2130 = vmax.xlane.f32.xlu0 %v2053
        %v2131 = vpop.xlane.xlu0 %2130
        %2132 = vmax.xlane.f32.xlu0 %v2054
        %v2133 = vpop.xlane.xlu0 %2132
        %2134 = vmax.xlane.f32.xlu0 %v2055
        %v2135 = vpop.xlane.xlu0 %2134
        %2136 = vmax.xlane.f32.xlu0 %v2056
        %v2137 = vpop.xlane.xlu0 %2136
        %2138 = vmax.xlane.f32.xlu0 %v2057
        %v2139 = vpop.xlane.xlu0 %2138
        %2140 = vmax.xlane.f32.xlu0 %v2058
        %v2141 = vpop.xlane.xlu0 %2140
        %2142 = vmax.xlane.f32.xlu0 %v2059
        %v2143 = vpop.xlane.xlu0 %2142
        %2144 = vmax.xlane.f32.xlu0 %v2060
        %v2145 = vpop.xlane.xlu0 %2144
        %2146 = vmax.xlane.f32.xlu0 %v2061
        %v2147 = vpop.xlane.xlu0 %2146
        %2148 = vmax.xlane.f32.xlu0 %v2062
        %v2149 = vpop.xlane.xlu0 %2148
        %2150 = vmax.xlane.f32.xlu0 %v2063
        %v2151 = vpop.xlane.xlu0 %2150
        %2152 = vmax.xlane.f32.xlu0 %v2064
        %v2153 = vpop.xlane.xlu0 %2152
        %2154 = vmax.xlane.f32.xlu0 %v2065
        %v2155 = vpop.xlane.xlu0 %2154
        %2156 = vmax.xlane.f32.xlu0 %v2066
        %v2157 = vpop.xlane.xlu0 %2156
        %2158 = vmax.xlane.f32.xlu0 %v2067
        %v2159 = vpop.xlane.xlu0 %2158
        %2160 = vmax.xlane.f32.xlu0 %v2068
        %v2161 = vpop.xlane.xlu0 %2160
        %2162 = vmax.xlane.f32.xlu0 %v2069
        %v2163 = vpop.xlane.xlu0 %2162
        %2164 = vmax.xlane.f32.xlu0 %v2070
        %v2165 = vpop.xlane.xlu0 %2164
        %2166 = vmax.xlane.f32.xlu0 %v2071
        %v2167 = vpop.xlane.xlu0 %2166
        %2168 = vmax.xlane.f32.xlu0 %v2072
        %v2169 = vpop.xlane.xlu0 %2168
        %2170 = vmax.xlane.f32.xlu0 %v2073
        %v2171 = vpop.xlane.xlu0 %2170
        %2172 = vmax.xlane.f32.xlu0 %v2074
        %v2173 = vpop.xlane.xlu0 %2172
        %2174 = vmax.xlane.f32.xlu0 %v2075
        %v2175 = vpop.xlane.xlu0 %2174
        %2176 = vmax.xlane.f32.xlu0 %v2076
        %v2177 = vpop.xlane.xlu0 %2176
        %2178 = vmax.xlane.f32.xlu0 %v2077
        %v2179 = vpop.xlane.xlu0 %2178
        %2180 = vmax.xlane.f32.xlu0 %v2078
        %v2181 = vpop.xlane.xlu0 %2180
        %2182 = vmax.xlane.f32.xlu0 %v2079
        %v2183 = vpop.xlane.xlu0 %2182
        %2184 = vmax.xlane.f32.xlu0 %v2080
        %v2185 = vpop.xlane.xlu0 %2184
        %2186 = vmax.xlane.f32.xlu0 %v2081
        %v2187 = vpop.xlane.xlu0 %2186
        %2188 = vmax.xlane.f32.xlu0 %v2082
        %v2189 = vpop.xlane.xlu0 %2188
        %2190 = vmax.xlane.f32.xlu0 %v2083
        %v2191 = vpop.xlane.xlu0 %2190
        %2192 = vmax.xlane.f32.xlu0 %v2084
        %v2193 = vpop.xlane.xlu0 %2192
        %2194 = vmax.xlane.f32.xlu0 %v2085
        %v2195 = vpop.xlane.xlu0 %2194
        %2196 = vmax.xlane.f32.xlu0 %v2086
        %v2197 = vpop.xlane.xlu0 %2196
        %2198 = vmax.xlane.f32.xlu0 %v2087
        %v2199 = vpop.xlane.xlu0 %2198
        %2200 = vmax.xlane.f32.xlu0 %v2088
        %v2201 = vpop.xlane.xlu0 %2200
        %2202 = vmax.xlane.f32.xlu0 %v2089
        %v2203 = vpop.xlane.xlu0 %2202
        %2204 = vmax.xlane.f32.xlu0 %v2090
        %v2205 = vpop.xlane.xlu0 %2204
        %2206 = vmax.xlane.f32.xlu0 %v2091
        %v2207 = vpop.xlane.xlu0 %2206
        %2208 = vmax.xlane.f32.xlu0 %v2092
        %v2209 = vpop.xlane.xlu0 %2208
        %2210 = vmax.xlane.f32.xlu0 %v2093
        %v2211 = vpop.xlane.xlu0 %2210
        %2212 = vmax.xlane.f32.xlu0 %v2094
        %v2213 = vpop.xlane.xlu0 %2212
        %2214 = vmax.xlane.f32.xlu0 %v2095
        %v2215 = vpop.xlane.xlu0 %2214
        %2216 = vmax.xlane.f32.xlu0 %v2096
        %v2217 = vpop.xlane.xlu0 %2216
        %2218 = vmax.xlane.f32.xlu0 %v2097
        %v2219 = vpop.xlane.xlu0 %2218
        %2220 = vmax.xlane.f32.xlu0 %v2098
        %v2221 = vpop.xlane.xlu0 %2220
        %2222 = vmax.xlane.f32.xlu0 %v2099
        %v2223 = vpop.xlane.xlu0 %2222
        %2224 = vmax.xlane.f32.xlu0 %v2100
        %v2225 = vpop.xlane.xlu0 %2224
        %2226 = vmax.xlane.f32.xlu0 %v2101
        %v2227 = vpop.xlane.xlu0 %2226
        %2228 = vmax.xlane.f32.xlu0 %v2102
        %v2229 = vpop.xlane.xlu0 %2228
        %2230 = vmax.xlane.f32.xlu0 %v2103
        %v2231 = vpop.xlane.xlu0 %2230
        %v2232 = vsub.f32 %v2040, %v2105
        %v2233 = vsub.f32 %v2041, %v2107
        %v2234 = vsub.f32 %v2042, %v2109
        %v2235 = vsub.f32 %v2043, %v2111
        %v2236 = vsub.f32 %v2044, %v2113
        %v2237 = vsub.f32 %v2045, %v2115
        %v2238 = vsub.f32 %v2046, %v2117
        %v2239 = vsub.f32 %v2047, %v2119
        %v2240 = vsub.f32 %v2048, %v2121
        %v2241 = vsub.f32 %v2049, %v2123
        %v2242 = vsub.f32 %v2050, %v2125
        %v2243 = vsub.f32 %v2051, %v2127
        %v2244 = vsub.f32 %v2052, %v2129
        %v2245 = vsub.f32 %v2053, %v2131
        %v2246 = vsub.f32 %v2054, %v2133
        %v2247 = vsub.f32 %v2055, %v2135
        %v2248 = vsub.f32 %v2056, %v2137
        %v2249 = vsub.f32 %v2057, %v2139
        %v2250 = vsub.f32 %v2058, %v2141
        %v2251 = vsub.f32 %v2059, %v2143
        %v2252 = vsub.f32 %v2060, %v2145
        %v2253 = vsub.f32 %v2061, %v2147
        %v2254 = vsub.f32 %v2062, %v2149
        %v2255 = vsub.f32 %v2063, %v2151
        %v2256 = vsub.f32 %v2064, %v2153
        %v2257 = vsub.f32 %v2065, %v2155
        %v2258 = vsub.f32 %v2066, %v2157
        %v2259 = vsub.f32 %v2067, %v2159
        %v2260 = vsub.f32 %v2068, %v2161
        %v2261 = vsub.f32 %v2069, %v2163
        %v2262 = vsub.f32 %v2070, %v2165
        %v2263 = vsub.f32 %v2071, %v2167
        %v2264 = vsub.f32 %v2072, %v2169
        %v2265 = vsub.f32 %v2073, %v2171
        %v2266 = vsub.f32 %v2074, %v2173
        %v2267 = vsub.f32 %v2075, %v2175
        %v2268 = vsub.f32 %v2076, %v2177
        %v2269 = vsub.f32 %v2077, %v2179
        %v2270 = vsub.f32 %v2078, %v2181
        %v2271 = vsub.f32 %v2079, %v2183
        %v2272 = vsub.f32 %v2080, %v2185
        %v2273 = vsub.f32 %v2081, %v2187
        %v2274 = vsub.f32 %v2082, %v2189
        %v2275 = vsub.f32 %v2083, %v2191
        %v2276 = vsub.f32 %v2084, %v2193
        %v2277 = vsub.f32 %v2085, %v2195
        %v2278 = vsub.f32 %v2086, %v2197
        %v2279 = vsub.f32 %v2087, %v2199
        %v2280 = vsub.f32 %v2088, %v2201
        %v2281 = vsub.f32 %v2089, %v2203
        %v2282 = vsub.f32 %v2090, %v2205
        %v2283 = vsub.f32 %v2091, %v2207
        %v2284 = vsub.f32 %v2092, %v2209
        %v2285 = vsub.f32 %v2093, %v2211
        %v2286 = vsub.f32 %v2094, %v2213
        %v2287 = vsub.f32 %v2095, %v2215
        %v2288 = vsub.f32 %v2096, %v2217
        %v2289 = vsub.f32 %v2097, %v2219
        %v2290 = vsub.f32 %v2098, %v2221
        %v2291 = vsub.f32 %v2099, %v2223
        %v2292 = vsub.f32 %v2100, %v2225
        %v2293 = vsub.f32 %v2101, %v2227
        %v2294 = vsub.f32 %v2102, %v2229
        %v2295 = vsub.f32 %v2103, %v2231
        %v2296 = vmul.f32 %v2232, 1.442695
        %v2297 = vpow.pop %v2296
        %v2298 = vmul.f32 %v2233, 1.442695
        %v2299 = vpow.pop %v2298
        %v2300 = vmul.f32 %v2234, 1.442695
        %v2301 = vpow.pop %v2300
        %v2302 = vmul.f32 %v2235, 1.442695
        %v2303 = vpow.pop %v2302
        %v2304 = vmul.f32 %v2236, 1.442695
        %v2305 = vpow.pop %v2304
        %v2306 = vmul.f32 %v2237, 1.442695
        %v2307 = vpow.pop %v2306
        %v2308 = vmul.f32 %v2238, 1.442695
        %v2309 = vpow.pop %v2308
        %v2310 = vmul.f32 %v2239, 1.442695
        %v2311 = vpow.pop %v2310
        %v2312 = vmul.f32 %v2240, 1.442695
        %v2313 = vpow.pop %v2312
        %v2314 = vmul.f32 %v2241, 1.442695
        %v2315 = vpow.pop %v2314
        %v2316 = vmul.f32 %v2242, 1.442695
        %v2317 = vpow.pop %v2316
        %v2318 = vmul.f32 %v2243, 1.442695
        %v2319 = vpow.pop %v2318
        %v2320 = vmul.f32 %v2244, 1.442695
        %v2321 = vpow.pop %v2320
        %v2322 = vmul.f32 %v2245, 1.442695
        %v2323 = vpow.pop %v2322
        %v2324 = vmul.f32 %v2246, 1.442695
        %v2325 = vpow.pop %v2324
        %v2326 = vmul.f32 %v2247, 1.442695
        %v2327 = vpow.pop %v2326
        %v2328 = vmul.f32 %v2248, 1.442695
        %v2329 = vpow.pop %v2328
        %v2330 = vmul.f32 %v2249, 1.442695
        %v2331 = vpow.pop %v2330
        %v2332 = vmul.f32 %v2250, 1.442695
        %v2333 = vpow.pop %v2332
        %v2334 = vmul.f32 %v2251, 1.442695
        %v2335 = vpow.pop %v2334
        %v2336 = vmul.f32 %v2252, 1.442695
        %v2337 = vpow.pop %v2336
        %v2338 = vmul.f32 %v2253, 1.442695
        %v2339 = vpow.pop %v2338
        %v2340 = vmul.f32 %v2254, 1.442695
        %v2341 = vpow.pop %v2340
        %v2342 = vmul.f32 %v2255, 1.442695
        %v2343 = vpow.pop %v2342
        %v2344 = vmul.f32 %v2256, 1.442695
        %v2345 = vpow.pop %v2344
        %v2346 = vmul.f32 %v2257, 1.442695
        %v2347 = vpow.pop %v2346
        %v2348 = vmul.f32 %v2258, 1.442695
        %v2349 = vpow.pop %v2348
        %v2350 = vmul.f32 %v2259, 1.442695
        %v2351 = vpow.pop %v2350
        %v2352 = vmul.f32 %v2260, 1.442695
        %v2353 = vpow.pop %v2352
        %v2354 = vmul.f32 %v2261, 1.442695
        %v2355 = vpow.pop %v2354
        %v2356 = vmul.f32 %v2262, 1.442695
        %v2357 = vpow.pop %v2356
        %v2358 = vmul.f32 %v2263, 1.442695
        %v2359 = vpow.pop %v2358
        %v2360 = vmul.f32 %v2264, 1.442695
        %v2361 = vpow.pop %v2360
        %v2362 = vmul.f32 %v2265, 1.442695
        %v2363 = vpow.pop %v2362
        %v2364 = vmul.f32 %v2266, 1.442695
        %v2365 = vpow.pop %v2364
        %v2366 = vmul.f32 %v2267, 1.442695
        %v2367 = vpow.pop %v2366
        %v2368 = vmul.f32 %v2268, 1.442695
        %v2369 = vpow.pop %v2368
        %v2370 = vmul.f32 %v2269, 1.442695
        %v2371 = vpow.pop %v2370
        %v2372 = vmul.f32 %v2270, 1.442695
        %v2373 = vpow.pop %v2372
        %v2374 = vmul.f32 %v2271, 1.442695
        %v2375 = vpow.pop %v2374
        %v2376 = vmul.f32 %v2272, 1.442695
        %v2377 = vpow.pop %v2376
        %v2378 = vmul.f32 %v2273, 1.442695
        %v2379 = vpow.pop %v2378
        %v2380 = vmul.f32 %v2274, 1.442695
        %v2381 = vpow.pop %v2380
        %v2382 = vmul.f32 %v2275, 1.442695
        %v2383 = vpow.pop %v2382
        %v2384 = vmul.f32 %v2276, 1.442695
        %v2385 = vpow.pop %v2384
        %v2386 = vmul.f32 %v2277, 1.442695
        %v2387 = vpow.pop %v2386
        %v2388 = vmul.f32 %v2278, 1.442695
        %v2389 = vpow.pop %v2388
        %v2390 = vmul.f32 %v2279, 1.442695
        %v2391 = vpow.pop %v2390
        %v2392 = vmul.f32 %v2280, 1.442695
        %v2393 = vpow.pop %v2392
        %v2394 = vmul.f32 %v2281, 1.442695
        %v2395 = vpow.pop %v2394
        %v2396 = vmul.f32 %v2282, 1.442695
        %v2397 = vpow.pop %v2396
        %v2398 = vmul.f32 %v2283, 1.442695
        %v2399 = vpow.pop %v2398
        %v2400 = vmul.f32 %v2284, 1.442695
        %v2401 = vpow.pop %v2400
        %v2402 = vmul.f32 %v2285, 1.442695
        %v2403 = vpow.pop %v2402
        %v2404 = vmul.f32 %v2286, 1.442695
        %v2405 = vpow.pop %v2404
        %v2406 = vmul.f32 %v2287, 1.442695
        %v2407 = vpow.pop %v2406
        %v2408 = vmul.f32 %v2288, 1.442695
        %v2409 = vpow.pop %v2408
        %v2410 = vmul.f32 %v2289, 1.442695
        %v2411 = vpow.pop %v2410
        %v2412 = vmul.f32 %v2290, 1.442695
        %v2413 = vpow.pop %v2412
        %v2414 = vmul.f32 %v2291, 1.442695
        %v2415 = vpow.pop %v2414
        %v2416 = vmul.f32 %v2292, 1.442695
        %v2417 = vpow.pop %v2416
        %v2418 = vmul.f32 %v2293, 1.442695
        %v2419 = vpow.pop %v2418
        %v2420 = vmul.f32 %v2294, 1.442695
        %v2421 = vpow.pop %v2420
        %v2422 = vmul.f32 %v2295, 1.442695
        %v2423 = vpow.pop %v2422
        %2424 = vadd.xlane.f32.xlu0 %v2297
        %v2425 = vpop.xlane.xlu0 %2424
        %2426 = vadd.xlane.f32.xlu0 %v2299
        %v2427 = vpop.xlane.xlu0 %2426
        %2428 = vadd.xlane.f32.xlu0 %v2301
        %v2429 = vpop.xlane.xlu0 %2428
        %2430 = vadd.xlane.f32.xlu0 %v2303
        %v2431 = vpop.xlane.xlu0 %2430
        %2432 = vadd.xlane.f32.xlu0 %v2305
        %v2433 = vpop.xlane.xlu0 %2432
        %2434 = vadd.xlane.f32.xlu0 %v2307
        %v2435 = vpop.xlane.xlu0 %2434
        %2436 = vadd.xlane.f32.xlu0 %v2309
        %v2437 = vpop.xlane.xlu0 %2436
        %2438 = vadd.xlane.f32.xlu0 %v2311
        %v2439 = vpop.xlane.xlu0 %2438
        %2440 = vadd.xlane.f32.xlu0 %v2313
        %v2441 = vpop.xlane.xlu0 %2440
        %2442 = vadd.xlane.f32.xlu0 %v2315
        %v2443 = vpop.xlane.xlu0 %2442
        %2444 = vadd.xlane.f32.xlu0 %v2317
        %v2445 = vpop.xlane.xlu0 %2444
        %2446 = vadd.xlane.f32.xlu0 %v2319
        %v2447 = vpop.xlane.xlu0 %2446
        %2448 = vadd.xlane.f32.xlu0 %v2321
        %v2449 = vpop.xlane.xlu0 %2448
        %2450 = vadd.xlane.f32.xlu0 %v2323
        %v2451 = vpop.xlane.xlu0 %2450
        %2452 = vadd.xlane.f32.xlu0 %v2325
        %v2453 = vpop.xlane.xlu0 %2452
        %2454 = vadd.xlane.f32.xlu0 %v2327
        %v2455 = vpop.xlane.xlu0 %2454
        %2456 = vadd.xlane.f32.xlu0 %v2329
        %v2457 = vpop.xlane.xlu0 %2456
        %2458 = vadd.xlane.f32.xlu0 %v2331
        %v2459 = vpop.xlane.xlu0 %2458
        %2460 = vadd.xlane.f32.xlu0 %v2333
        %v2461 = vpop.xlane.xlu0 %2460
        %2462 = vadd.xlane.f32.xlu0 %v2335
        %v2463 = vpop.xlane.xlu0 %2462
        %2464 = vadd.xlane.f32.xlu0 %v2337
        %v2465 = vpop.xlane.xlu0 %2464
        %2466 = vadd.xlane.f32.xlu0 %v2339
        %v2467 = vpop.xlane.xlu0 %2466
        %2468 = vadd.xlane.f32.xlu0 %v2341
        %v2469 = vpop.xlane.xlu0 %2468
        %2470 = vadd.xlane.f32.xlu0 %v2343
        %v2471 = vpop.xlane.xlu0 %2470
        %2472 = vadd.xlane.f32.xlu0 %v2345
        %v2473 = vpop.xlane.xlu0 %2472
        %2474 = vadd.xlane.f32.xlu0 %v2347
        %v2475 = vpop.xlane.xlu0 %2474
        %2476 = vadd.xlane.f32.xlu0 %v2349
        %v2477 = vpop.xlane.xlu0 %2476
        %2478 = vadd.xlane.f32.xlu0 %v2351
        %v2479 = vpop.xlane.xlu0 %2478
        %2480 = vadd.xlane.f32.xlu0 %v2353
        %v2481 = vpop.xlane.xlu0 %2480
        %2482 = vadd.xlane.f32.xlu0 %v2355
        %v2483 = vpop.xlane.xlu0 %2482
        %2484 = vadd.xlane.f32.xlu0 %v2357
        %v2485 = vpop.xlane.xlu0 %2484
        %2486 = vadd.xlane.f32.xlu0 %v2359
        %v2487 = vpop.xlane.xlu0 %2486
        %2488 = vadd.xlane.f32.xlu0 %v2361
        %v2489 = vpop.xlane.xlu0 %2488
        %2490 = vadd.xlane.f32.xlu0 %v2363
        %v2491 = vpop.xlane.xlu0 %2490
        %2492 = vadd.xlane.f32.xlu0 %v2365
        %v2493 = vpop.xlane.xlu0 %2492
        %2494 = vadd.xlane.f32.xlu0 %v2367
        %v2495 = vpop.xlane.xlu0 %2494
        %2496 = vadd.xlane.f32.xlu0 %v2369
        %v2497 = vpop.xlane.xlu0 %2496
        %2498 = vadd.xlane.f32.xlu0 %v2371
        %v2499 = vpop.xlane.xlu0 %2498
        %2500 = vadd.xlane.f32.xlu0 %v2373
        %v2501 = vpop.xlane.xlu0 %2500
        %2502 = vadd.xlane.f32.xlu0 %v2375
        %v2503 = vpop.xlane.xlu0 %2502
        %2504 = vadd.xlane.f32.xlu0 %v2377
        %v2505 = vpop.xlane.xlu0 %2504
        %2506 = vadd.xlane.f32.xlu0 %v2379
        %v2507 = vpop.xlane.xlu0 %2506
        %2508 = vadd.xlane.f32.xlu0 %v2381
        %v2509 = vpop.xlane.xlu0 %2508
        %2510 = vadd.xlane.f32.xlu0 %v2383
        %v2511 = vpop.xlane.xlu0 %2510
        %2512 = vadd.xlane.f32.xlu0 %v2385
        %v2513 = vpop.xlane.xlu0 %2512
        %2514 = vadd.xlane.f32.xlu0 %v2387
        %v2515 = vpop.xlane.xlu0 %2514
        %2516 = vadd.xlane.f32.xlu0 %v2389
        %v2517 = vpop.xlane.xlu0 %2516
        %2518 = vadd.xlane.f32.xlu0 %v2391
        %v2519 = vpop.xlane.xlu0 %2518
        %2520 = vadd.xlane.f32.xlu0 %v2393
        %v2521 = vpop.xlane.xlu0 %2520
        %2522 = vadd.xlane.f32.xlu0 %v2395
        %v2523 = vpop.xlane.xlu0 %2522
        %2524 = vadd.xlane.f32.xlu0 %v2397
        %v2525 = vpop.xlane.xlu0 %2524
        %2526 = vadd.xlane.f32.xlu0 %v2399
        %v2527 = vpop.xlane.xlu0 %2526
        %2528 = vadd.xlane.f32.xlu0 %v2401
        %v2529 = vpop.xlane.xlu0 %2528
        %2530 = vadd.xlane.f32.xlu0 %v2403
        %v2531 = vpop.xlane.xlu0 %2530
        %2532 = vadd.xlane.f32.xlu0 %v2405
        %v2533 = vpop.xlane.xlu0 %2532
        %2534 = vadd.xlane.f32.xlu0 %v2407
        %v2535 = vpop.xlane.xlu0 %2534
        %2536 = vadd.xlane.f32.xlu0 %v2409
        %v2537 = vpop.xlane.xlu0 %2536
        %2538 = vadd.xlane.f32.xlu0 %v2411
        %v2539 = vpop.xlane.xlu0 %2538
        %2540 = vadd.xlane.f32.xlu0 %v2413
        %v2541 = vpop.xlane.xlu0 %2540
        %2542 = vadd.xlane.f32.xlu0 %v2415
        %v2543 = vpop.xlane.xlu0 %2542
        %2544 = vadd.xlane.f32.xlu0 %v2417
        %v2545 = vpop.xlane.xlu0 %2544
        %2546 = vadd.xlane.f32.xlu0 %v2419
        %v2547 = vpop.xlane.xlu0 %2546
        %2548 = vadd.xlane.f32.xlu0 %v2421
        %v2549 = vpop.xlane.xlu0 %2548
        %2550 = vadd.xlane.f32.xlu0 %v2423
        %v2551 = vpop.xlane.xlu0 %2550
        %v2552 = vlog2.pop %v2425
        %v2553 = vmul.f32 %v2552, 0.6931472
        %v2554 = vlog2.pop %v2427
        %v2555 = vmul.f32 %v2554, 0.6931472
        %v2556 = vlog2.pop %v2429
        %v2557 = vmul.f32 %v2556, 0.6931472
        %v2558 = vlog2.pop %v2431
        %v2559 = vmul.f32 %v2558, 0.6931472
        %v2560 = vlog2.pop %v2433
        %v2561 = vmul.f32 %v2560, 0.6931472
        %v2562 = vlog2.pop %v2435
        %v2563 = vmul.f32 %v2562, 0.6931472
        %v2564 = vlog2.pop %v2437
        %v2565 = vmul.f32 %v2564, 0.6931472
        %v2566 = vlog2.pop %v2439
        %v2567 = vmul.f32 %v2566, 0.6931472
        %v2568 = vlog2.pop %v2441
        %v2569 = vmul.f32 %v2568, 0.6931472
        %v2570 = vlog2.pop %v2443
        %v2571 = vmul.f32 %v2570, 0.6931472
        %v2572 = vlog2.pop %v2445
        %v2573 = vmul.f32 %v2572, 0.6931472
        %v2574 = vlog2.pop %v2447
        %v2575 = vmul.f32 %v2574, 0.6931472
        %v2576 = vlog2.pop %v2449
        %v2577 = vmul.f32 %v2576, 0.6931472
        %v2578 = vlog2.pop %v2451
        %v2579 = vmul.f32 %v2578, 0.6931472
        %v2580 = vlog2.pop %v2453
        %v2581 = vmul.f32 %v2580, 0.6931472
        %v2582 = vlog2.pop %v2455
        %v2583 = vmul.f32 %v2582, 0.6931472
        %v2584 = vlog2.pop %v2457
        %v2585 = vmul.f32 %v2584, 0.6931472
        %v2586 = vlog2.pop %v2459
        %v2587 = vmul.f32 %v2586, 0.6931472
        %v2588 = vlog2.pop %v2461
        %v2589 = vmul.f32 %v2588, 0.6931472
        %v2590 = vlog2.pop %v2463
        %v2591 = vmul.f32 %v2590, 0.6931472
        %v2592 = vlog2.pop %v2465
        %v2593 = vmul.f32 %v2592, 0.6931472
        %v2594 = vlog2.pop %v2467
        %v2595 = vmul.f32 %v2594, 0.6931472
        %v2596 = vlog2.pop %v2469
        %v2597 = vmul.f32 %v2596, 0.6931472
        %v2598 = vlog2.pop %v2471
        %v2599 = vmul.f32 %v2598, 0.6931472
        %v2600 = vlog2.pop %v2473
        %v2601 = vmul.f32 %v2600, 0.6931472
        %v2602 = vlog2.pop %v2475
        %v2603 = vmul.f32 %v2602, 0.6931472
        %v2604 = vlog2.pop %v2477
        %v2605 = vmul.f32 %v2604, 0.6931472
        %v2606 = vlog2.pop %v2479
        %v2607 = vmul.f32 %v2606, 0.6931472
        %v2608 = vlog2.pop %v2481
        %v2609 = vmul.f32 %v2608, 0.6931472
        %v2610 = vlog2.pop %v2483
        %v2611 = vmul.f32 %v2610, 0.6931472
        %v2612 = vlog2.pop %v2485
        %v2613 = vmul.f32 %v2612, 0.6931472
        %v2614 = vlog2.pop %v2487
        %v2615 = vmul.f32 %v2614, 0.6931472
        %v2616 = vlog2.pop %v2489
        %v2617 = vmul.f32 %v2616, 0.6931472
        %v2618 = vlog2.pop %v2491
        %v2619 = vmul.f32 %v2618, 0.6931472
        %v2620 = vlog2.pop %v2493
        %v2621 = vmul.f32 %v2620, 0.6931472
        %v2622 = vlog2.pop %v2495
        %v2623 = vmul.f32 %v2622, 0.6931472
        %v2624 = vlog2.pop %v2497
        %v2625 = vmul.f32 %v2624, 0.6931472
        %v2626 = vlog2.pop %v2499
        %v2627 = vmul.f32 %v2626, 0.6931472
        %v2628 = vlog2.pop %v2501
        %v2629 = vmul.f32 %v2628, 0.6931472
        %v2630 = vlog2.pop %v2503
        %v2631 = vmul.f32 %v2630, 0.6931472
        %v2632 = vlog2.pop %v2505
        %v2633 = vmul.f32 %v2632, 0.6931472
        %v2634 = vlog2.pop %v2507
        %v2635 = vmul.f32 %v2634, 0.6931472
        %v2636 = vlog2.pop %v2509
        %v2637 = vmul.f32 %v2636, 0.6931472
        %v2638 = vlog2.pop %v2511
        %v2639 = vmul.f32 %v2638, 0.6931472
        %v2640 = vlog2.pop %v2513
        %v2641 = vmul.f32 %v2640, 0.6931472
        %v2642 = vlog2.pop %v2515
        %v2643 = vmul.f32 %v2642, 0.6931472
        %v2644 = vlog2.pop %v2517
        %v2645 = vmul.f32 %v2644, 0.6931472
        %v2646 = vlog2.pop %v2519
        %v2647 = vmul.f32 %v2646, 0.6931472
        %v2648 = vlog2.pop %v2521
        %v2649 = vmul.f32 %v2648, 0.6931472
        %v2650 = vlog2.pop %v2523
        %v2651 = vmul.f32 %v2650, 0.6931472
        %v2652 = vlog2.pop %v2525
        %v2653 = vmul.f32 %v2652, 0.6931472
        %v2654 = vlog2.pop %v2527
        %v2655 = vmul.f32 %v2654, 0.6931472
        %v2656 = vlog2.pop %v2529
        %v2657 = vmul.f32 %v2656, 0.6931472
        %v2658 = vlog2.pop %v2531
        %v2659 = vmul.f32 %v2658, 0.6931472
        %v2660 = vlog2.pop %v2533
        %v2661 = vmul.f32 %v2660, 0.6931472
        %v2662 = vlog2.pop %v2535
        %v2663 = vmul.f32 %v2662, 0.6931472
        %v2664 = vlog2.pop %v2537
        %v2665 = vmul.f32 %v2664, 0.6931472
        %v2666 = vlog2.pop %v2539
        %v2667 = vmul.f32 %v2666, 0.6931472
        %v2668 = vlog2.pop %v2541
        %v2669 = vmul.f32 %v2668, 0.6931472
        %v2670 = vlog2.pop %v2543
        %v2671 = vmul.f32 %v2670, 0.6931472
        %v2672 = vlog2.pop %v2545
        %v2673 = vmul.f32 %v2672, 0.6931472
        %v2674 = vlog2.pop %v2547
        %v2675 = vmul.f32 %v2674, 0.6931472
        %v2676 = vlog2.pop %v2549
        %v2677 = vmul.f32 %v2676, 0.6931472
        %v2678 = vlog2.pop %v2551
        %v2679 = vmul.f32 %v2678, 0.6931472
        %v2680 = vsub.f32 %v2232, %v2553
        %v2681 = vsub.f32 %v2233, %v2555
        %v2682 = vsub.f32 %v2234, %v2557
        %v2683 = vsub.f32 %v2235, %v2559
        %v2684 = vsub.f32 %v2236, %v2561
        %v2685 = vsub.f32 %v2237, %v2563
        %v2686 = vsub.f32 %v2238, %v2565
        %v2687 = vsub.f32 %v2239, %v2567
        %v2688 = vsub.f32 %v2240, %v2569
        %v2689 = vsub.f32 %v2241, %v2571
        %v2690 = vsub.f32 %v2242, %v2573
        %v2691 = vsub.f32 %v2243, %v2575
        %v2692 = vsub.f32 %v2244, %v2577
        %v2693 = vsub.f32 %v2245, %v2579
        %v2694 = vsub.f32 %v2246, %v2581
        %v2695 = vsub.f32 %v2247, %v2583
        %v2696 = vsub.f32 %v2248, %v2585
        %v2697 = vsub.f32 %v2249, %v2587
        %v2698 = vsub.f32 %v2250, %v2589
        %v2699 = vsub.f32 %v2251, %v2591
        %v2700 = vsub.f32 %v2252, %v2593
        %v2701 = vsub.f32 %v2253, %v2595
        %v2702 = vsub.f32 %v2254, %v2597
        %v2703 = vsub.f32 %v2255, %v2599
        %v2704 = vsub.f32 %v2256, %v2601
        %v2705 = vsub.f32 %v2257, %v2603
        %v2706 = vsub.f32 %v2258, %v2605
        %v2707 = vsub.f32 %v2259, %v2607
        %v2708 = vsub.f32 %v2260, %v2609
        %v2709 = vsub.f32 %v2261, %v2611
        %v2710 = vsub.f32 %v2262, %v2613
        %v2711 = vsub.f32 %v2263, %v2615
        %v2712 = vsub.f32 %v2264, %v2617
        %v2713 = vsub.f32 %v2265, %v2619
        %v2714 = vsub.f32 %v2266, %v2621
        %v2715 = vsub.f32 %v2267, %v2623
        %v2716 = vsub.f32 %v2268, %v2625
        %v2717 = vsub.f32 %v2269, %v2627
        %v2718 = vsub.f32 %v2270, %v2629
        %v2719 = vsub.f32 %v2271, %v2631
        %v2720 = vsub.f32 %v2272, %v2633
        %v2721 = vsub.f32 %v2273, %v2635
        %v2722 = vsub.f32 %v2274, %v2637
        %v2723 = vsub.f32 %v2275, %v2639
        %v2724 = vsub.f32 %v2276, %v2641
        %v2725 = vsub.f32 %v2277, %v2643
        %v2726 = vsub.f32 %v2278, %v2645
        %v2727 = vsub.f32 %v2279, %v2647
        %v2728 = vsub.f32 %v2280, %v2649
        %v2729 = vsub.f32 %v2281, %v2651
        %v2730 = vsub.f32 %v2282, %v2653
        %v2731 = vsub.f32 %v2283, %v2655
        %v2732 = vsub.f32 %v2284, %v2657
        %v2733 = vsub.f32 %v2285, %v2659
        %v2734 = vsub.f32 %v2286, %v2661
        %v2735 = vsub.f32 %v2287, %v2663
        %v2736 = vsub.f32 %v2288, %v2665
        %v2737 = vsub.f32 %v2289, %v2667
        %v2738 = vsub.f32 %v2290, %v2669
        %v2739 = vsub.f32 %v2291, %v2671
        %v2740 = vsub.f32 %v2292, %v2673
        %v2741 = vsub.f32 %v2293, %v2675
        %v2742 = vsub.f32 %v2294, %v2677
        %v2743 = vsub.f32 %v2295, %v2679
        %2744 = vst [vmem:[%s286] sm:$0xff] %v2680
        %2745 = vst [vmem:[%s286 + $0x8] sm:$0xff] %v2681
        %2746 = vst [vmem:[%s286 + $0x10] sm:$0xff] %v2682
        %2747 = vst [vmem:[%s286 + $0x18] sm:$0xff] %v2683
        %2748 = vst [vmem:[%s286 + $0x20] sm:$0xff] %v2684
        %2749 = vst [vmem:[%s286 + $0x28] sm:$0xff] %v2685
        %2750 = vst [vmem:[%s286 + $0x30] sm:$0xff] %v2686
        %2751 = vst [vmem:[%s286 + $0x38] sm:$0xff] %v2687
        %2752 = vst [vmem:[%s286 + $0x40] sm:$0xff] %v2688
        %2753 = vst [vmem:[%s286 + $0x48] sm:$0xff] %v2689
        %2754 = vst [vmem:[%s286 + $0x50] sm:$0xff] %v2690
        %2755 = vst [vmem:[%s286 + $0x58] sm:$0xff] %v2691
        %2756 = vst [vmem:[%s286 + $0x60] sm:$0xff] %v2692
        %2757 = vst [vmem:[%s286 + $0x68] sm:$0xff] %v2693
        %2758 = vst [vmem:[%s286 + $0x70] sm:$0xff] %v2694
        %2759 = vst [vmem:[%s286 + $0x78] sm:$0xff] %v2695
        %2760 = vst [vmem:[%s286 + $0x80] sm:$0xff] %v2696
        %2761 = vst [vmem:[%s286 + $0x88] sm:$0xff] %v2697
        %2762 = vst [vmem:[%s286 + $0x90] sm:$0xff] %v2698
        %2763 = vst [vmem:[%s286 + $0x98] sm:$0xff] %v2699
        %2764 = vst [vmem:[%s286 + $0xa0] sm:$0xff] %v2700
        %2765 = vst [vmem:[%s286 + $0xa8] sm:$0xff] %v2701
        %2766 = vst [vmem:[%s286 + $0xb0] sm:$0xff] %v2702
        %2767 = vst [vmem:[%s286 + $0xb8] sm:$0xff] %v2703
        %2768 = vst [vmem:[%s286 + $0xc0] sm:$0xff] %v2704
        %2769 = vst [vmem:[%s286 + $0xc8] sm:$0xff] %v2705
        %2770 = vst [vmem:[%s286 + $0xd0] sm:$0xff] %v2706
        %2771 = vst [vmem:[%s286 + $0xd8] sm:$0xff] %v2707
        %2772 = vst [vmem:[%s286 + $0xe0] sm:$0xff] %v2708
        %2773 = vst [vmem:[%s286 + $0xe8] sm:$0xff] %v2709
        %2774 = vst [vmem:[%s286 + $0xf0] sm:$0xff] %v2710
        %2775 = vst [vmem:[%s286 + $0xf8] sm:$0xff] %v2711
        %2776 = vst [vmem:[%s286 + $0x100] sm:$0xff] %v2712
        %2777 = vst [vmem:[%s286 + $0x108] sm:$0xff] %v2713
        %2778 = vst [vmem:[%s286 + $0x110] sm:$0xff] %v2714
        %2779 = vst [vmem:[%s286 + $0x118] sm:$0xff] %v2715
        %2780 = vst [vmem:[%s286 + $0x120] sm:$0xff] %v2716
        %2781 = vst [vmem:[%s286 + $0x128] sm:$0xff] %v2717
        %2782 = vst [vmem:[%s286 + $0x130] sm:$0xff] %v2718
        %2783 = vst [vmem:[%s286 + $0x138] sm:$0xff] %v2719
        %2784 = vst [vmem:[%s286 + $0x140] sm:$0xff] %v2720
        %2785 = vst [vmem:[%s286 + $0x148] sm:$0xff] %v2721
        %2786 = vst [vmem:[%s286 + $0x150] sm:$0xff] %v2722
        %2787 = vst [vmem:[%s286 + $0x158] sm:$0xff] %v2723
        %2788 = vst [vmem:[%s286 + $0x160] sm:$0xff] %v2724
        %2789 = vst [vmem:[%s286 + $0x168] sm:$0xff] %v2725
        %2790 = vst [vmem:[%s286 + $0x170] sm:$0xff] %v2726
        %2791 = vst [vmem:[%s286 + $0x178] sm:$0xff] %v2727
        %2792 = vst [vmem:[%s286 + $0x180] sm:$0xff] %v2728
        %2793 = vst [vmem:[%s286 + $0x188] sm:$0xff] %v2729
        %2794 = vst [vmem:[%s286 + $0x190] sm:$0xff] %v2730
        %2795 = vst [vmem:[%s286 + $0x198] sm:$0xff] %v2731
        %2796 = vst [vmem:[%s286 + $0x1a0] sm:$0xff] %v2732
        %2797 = vst [vmem:[%s286 + $0x1a8] sm:$0xff] %v2733
        %2798 = vst [vmem:[%s286 + $0x1b0] sm:$0xff] %v2734
        %2799 = vst [vmem:[%s286 + $0x1b8] sm:$0xff] %v2735
        %2800 = vst [vmem:[%s286 + $0x1c0] sm:$0xff] %v2736
        %2801 = vst [vmem:[%s286 + $0x1c8] sm:$0xff] %v2737
        %2802 = vst [vmem:[%s286 + $0x1d0] sm:$0xff] %v2738
        %2803 = vst [vmem:[%s286 + $0x1d8] sm:$0xff] %v2739
        %2804 = vst [vmem:[%s286 + $0x1e0] sm:$0xff] %v2740
        %2805 = vst [vmem:[%s286 + $0x1e8] sm:$0xff] %v2741
        %2806 = vst [vmem:[%s286 + $0x1f0] sm:$0xff] %v2742
        %2807 = vst [vmem:[%s286 + $0x1f8] sm:$0xff] %v2743
        %s2808 = sand.u32 %s187, 1
        %s2809 = scalar_lea.sflag [#allocation5], %s2808
        %s2810 = sand.u32 %s187, 1
        %s2811 = smul.addr %s2810, 512
        %s2812 = scalar_lea.vmem [#allocation4], %s2811
        // Predicated region
        $region49: #{tpu_custom_call.1} parent=47 // pred_check
          %p2813 = pneg %p197
        $region50: #{tpu_custom_call.1} parent=47 // pred_check_branch
          %2815 = sbr.rel (%p2813) target = $region52
        $region51: #{tpu_custom_call.1} parent=47 // pred_region
          %s2816 = smul.u32 64, %s23
          %s2818 = ssub.s32 8192, 8192
          %2819 = vsyncadd %s2809, %s2818
          %s2820 = smul.addr %s2816, 128
          %s2821 = scalar_lea.hbm %s8, %s2820
          %s2822 = sshll.u32 %s2812, 4
          %s2823 = int_to_ptr.vmem [resolvable:$true] %s2822
          %2828 = dma.vmem_to_hbm [thread:$0]  %s2823, 8192, %s2821, %s2809, 128, 128, 8
        $region52: #{tpu_custom_call.1} parent=47 // pred_fallthru
          _
      $region48: #{tpu_custom_call.1} parent=5 // pred_fallthru
        _
      %p2829 = scmp.le.s32.totalorder 2, %s18
      // Predicated region
      $region53: #{tpu_custom_call.1} parent=5 // pred_check
        %p2830 = pneg %p2829
      $region54: #{tpu_custom_call.1} parent=5 // pred_check_branch
        %2832 = sbr.rel (%p2830) target = $region56
      $region55: #{tpu_custom_call.1} parent=5 // pred_region
        %s2833 = ssub.s32 %s18, 2
        // Predicated region
        $region57: #{tpu_custom_call.1} parent=55 // pred_check
          %p2834 = pneg %p203
        $region58: #{tpu_custom_call.1} parent=55 // pred_check_branch
          %2836 = sbr.rel (%p2834) target = $region60
        $region59: #{tpu_custom_call.1} parent=55 // pred_region
          %s2837 = sand.u32 %s188, 1
          %s2838 = scalar_lea.sflag [#allocation5], %s2837
          %s2839 = sand.u32 %s188, 1
          %s2840 = smul.addr %s2839, 512
          %s2841 = scalar_lea.vmem [#allocation4], %s2840
          %2842 = dma.done %s2838, 8192
        $region60: #{tpu_custom_call.1} parent=55 // pred_fallthru
          _
      $region56: #{tpu_custom_call.1} parent=5 // pred_fallthru
        _
    $region6: #{tpu_custom_call.1} parent=1 // loop_footer
      %s22 = sadd.s32 1, %s18
    $region7: #{tpu_custom_call.1} parent=1 // loop_footer_branch
      %17 = sbr.rel target = $region3
    $region8: #{tpu_custom_call.1} parent=1 // loop_exit
      _
    %2843 = vsyncpa [#allocation5], 1
    %s2844 = scalar_lea.sflag [#allocation5], 1
    %2845 = vsyncpa %s2844, 1

</llo_original>
